<compile_context>
chip_gen: v7x
topology: tpu7x:2x2x1
jax: 0.10.0
libtpu: 0.0.40
codegen_flags: <defaults>
</compile_context>

<pallas_src>
import functools

import jax
import jax.numpy as jnp
import numpy as np
from jax.experimental import pallas as pl
from jax.experimental.pallas import tpu as pltpu


def _round_up(v, m):
    return ((v + m - 1) // m) * m


def _shape_branch_kernel(x_ref, w1_ref, b1_ref, w2_ref, b2_ref, out_ref,
                         *, B, H, W, C, HID, CPAD):
    # Refs (per grid step = B ROIs):
    #   x_ref:   (B, H, W, C)   bf16  unpadded NHWC input block
    #   w1_ref:  (9*C, HID)     bf16  3x3 conv weights, im2col-flat (tap-major rows)
    #   b1_ref:  (1, HID)       f32
    #   w2_ref:  (HID, 1)       bf16  1x1 conv weights (HID -> 1)
    #   b2_ref:  (1, 1)         f32
    #   out_ref: (1, B, CPAD)   f32   pooled vectors, channels padded to lane width
    HW = H * W
    BHW = B * HW

    xf = x_ref[...].astype(jnp.float32)                        # (B, H, W, C)

    # Build the pad=1 halo as a value in VMEM (no HBM pad op in the wrapper).
    zw = jnp.zeros((B, H, 1, C), jnp.float32)
    xp = jnp.concatenate([zw, xf, zw], axis=2)                 # (B, H, W+2, C)
    zh = jnp.zeros((B, 1, W + 2, C), jnp.float32)
    xp = jnp.concatenate([zh, xp, zh], axis=1)                 # (B, H+2, W+2, C)

    # im2col: 9 shifted windows concatenated along channels -> single K=9C matmul.
    wins = [xp[:, ky:ky + H, kx:kx + W, :]
            for ky in range(3) for kx in range(3)]
    lhs = jnp.concatenate(wins, axis=-1).reshape(BHW, 9 * C)   # (BHW, 9C) f32
    lhs = lhs.astype(jnp.bfloat16)

    # conv3x3 (cross-correlation, pad=1) + bias + ReLU: one MXU matmul, f32 acc.
    acc = jnp.dot(lhs, w1_ref[...], preferred_element_type=jnp.float32)
    hid = jnp.maximum(acc + b1_ref[...], 0.0)                  # (BHW, HID) f32

    # conv1x1 (HID -> 1) + bias; sigmoid via EUP exp + approximate reciprocal.
    logits = jnp.dot(hid.astype(jnp.bfloat16), w2_ref[...],
                     preferred_element_type=jnp.float32) + b2_ref[...]   # (BHW, 1)
    mask = pl.reciprocal(1.0 + jnp.exp(-logits), approx=True)

    # Masked global average pool; C stays in the lane axis so the result lands
    # directly in the lane-dense output block.
    attended = xf.reshape(B, HW, C) * mask.reshape(B, HW, 1)
    vec = jnp.sum(attended, axis=1) * (1.0 / HW)               # (B, C) f32

    if CPAD > C:
        vec = jnp.concatenate(
            [vec, jnp.zeros((B, CPAD - C), jnp.float32)], axis=-1)
    out_ref[...] = vec.reshape(1, B, CPAD)                     # single full store


def _pick_block_n(N, H, W, C, HID, CPAD, max_block_n, vmem_budget_bytes):
    """Largest B (ROIs per grid step) whose working set fits the VMEM budget,
    then capped so grid_n >= 2 (both TensorCores get work on dual-TC chips).
    On single-TC chips the extra grid step costs only ~0.35us."""
    def step_bytes(B):
        bhw = B * H * W
        return (2 * B * H * W * C * 2          # double-buffered bf16 input block
                + 2 * bhw * 9 * C * 4          # padded tile + f32 im2col windows
                + bhw * 9 * C * 2              # bf16 matmul LHS
                + bhw * HID * 4                # f32 conv activations
                + bhw * HID * 2                # bf16 copy for the 1x1 matmul
                + 2 * 9 * C * HID * 2          # double-buffered conv1 weights
                + 2 * B * CPAD * 4)            # double-buffered output block
    B = max(1, min(max_block_n, N))
    while B > 1 and step_bytes(B) > vmem_budget_bytes:
        B -= 1
    if N >= 2:
        B = min(B, (N + 1) // 2)
    return B


def _shape_branch_single(x_nhwc_bf16, w1_flat, b1_row, w2_col, b2_s, *, max_block_n=8):
    """x_nhwc_bf16: (N, H, W, C) bf16. Returns (N, C) float32 pooled vectors."""
    N, H, W, C = x_nhwc_bf16.shape
    HID = w1_flat.shape[-1]
    CPAD = _round_up(max(C, 128), 128)        # lane-dense output block width
    B = _pick_block_n(N, H, W, C, HID, CPAD, max_block_n,
                      vmem_budget_bytes=32 * 1024 * 1024)
    grid_n = pl.cdiv(N, B)
    NP = grid_n * B

    x = x_nhwc_bf16
    if NP != N:                               # pad batch (extra rows discarded below)
        x = jnp.pad(x, ((0, NP - N), (0, 0), (0, 0), (0, 0)))

    kernel = functools.partial(_shape_branch_kernel,
                               B=B, H=H, W=W, C=C, HID=HID, CPAD=CPAD)
    out = pl.pallas_call(
        kernel,
        out_shape=jax.ShapeDtypeStruct((grid_n, B, CPAD), jnp.float32),
        grid_spec=pltpu.PrefetchScalarGridSpec(
            num_scalar_prefetch=0,
            grid=(grid_n,),
            in_specs=[
                pl.BlockSpec((B, H, W, C), lambda n: (n, 0, 0, 0)),
                pl.BlockSpec((9 * C, HID), lambda n: (0, 0)),   # VMEM-resident weights
                pl.BlockSpec((1, HID), lambda n: (0, 0)),
                pl.BlockSpec((HID, 1), lambda n: (0, 0)),
                pl.BlockSpec((1, 1), lambda n: (0, 0)),
            ],
            out_specs=pl.BlockSpec((1, B, CPAD), lambda n: (n, 0, 0)),
        ),
        compiler_params=pltpu.CompilerParams(
            dimension_semantics=("parallel",),
            vmem_limit_bytes=48 * 1024 * 1024),
    )(x, w1_flat, b1_row, w2_col, b2_s)
    return out.reshape(NP, CPAD)[:N, :C]


@jax.jit
def _forward_one(feats_nchw, w1_flat, b1_row, w2_col, b2_s):
    # NCHW -> NHWC transpose + bf16 cast are plain-JAX glue outside the kernel.
    x = jnp.transpose(feats_nchw, (0, 2, 3, 1)).astype(jnp.bfloat16)
    return _shape_branch_single(x, w1_flat, b1_row, w2_col, b2_s)


def shape_branch_bottleneck(roi_pooled, params):
    """roi_pooled: list of NCHW arrays (like the PyTorch module). Returns list of [N, C]."""
    w1, b1, w2, b2 = params
    c_in, hid = w1.shape[2], w1.shape[3]
    # Kernel-friendly parameter layouts, prepared once outside the kernel.
    w1_flat = w1.reshape(9 * c_in, hid).astype(jnp.bfloat16)   # (9C, HID), tap-major rows
    b1_row = b1.reshape(1, hid).astype(jnp.float32)
    w2_col = w2.reshape(hid, 1).astype(jnp.bfloat16)
    b2_s = jnp.asarray(b2, jnp.float32).reshape(1, 1)
    return [_forward_one(f, w1_flat, b1_row, w2_col, b2_s) for f in roi_pooled]


def init_params(key, in_channels, hidden=256):
    # Deterministic synthetic parameters; shapes match nn.Conv2d(in_channels,256,3), nn.Conv2d(256,1,1).
    k1, k2, k3, k4 = jax.random.split(key, 4)
    w1 = jax.random.normal(k1, (3, 3, in_channels, hidden), jnp.float32) * 0.05  # HWIO
    b1 = jax.random.normal(k2, (hidden,), jnp.float32) * 0.05
    w2 = jax.random.normal(k3, (hidden,), jnp.float32) * 0.05                    # 1x1 conv: 256 -> 1
    b2 = jax.random.normal(k4, (), jnp.float32) * 0.05
    return w1, b1, w2, b2


def reference_forward(roi_pooled, params):
    """Pure-JAX (XLA conv) reference of the PyTorch forward, for verification."""
    w1, b1, w2, b2 = params
    hid = w1.shape[-1]
    outs = []
    for feats in roi_pooled:
        x = jnp.transpose(feats, (0, 2, 3, 1)).astype(jnp.float32)
        y = jax.lax.conv_general_dilated(
            x, w1, (1, 1), ((1, 1), (1, 1)),
            dimension_numbers=('NHWC', 'HWIO', 'NHWC'),
            precision=jax.lax.Precision.HIGHEST) + b1.reshape(1, 1, 1, hid)
        y = jnp.maximum(y, 0.0)
        z = jax.lax.conv_general_dilated(
            y, w2.reshape(1, 1, hid, 1), (1, 1), ((0, 0), (0, 0)),
            dimension_numbers=('NHWC', 'HWIO', 'NHWC'),
            precision=jax.lax.Precision.HIGHEST) + b2
        mask = jax.nn.sigmoid(z)
        outs.append(jnp.mean(x * mask, axis=(1, 2)))
    return outs


if __name__ == "__main__":
    key = jax.random.PRNGKey(0)
    kp, kx1, kx2 = jax.random.split(key, 3)
    in_channels = 4
    params = init_params(kp, in_channels)

    # roi_pooled: list of NCHW ROI feature maps (mirrors the PyTorch module input).
    roi_pooled = [
        jax.random.normal(kx1, (2, in_channels, 16, 16), jnp.float32),
        jax.random.normal(kx2, (3, in_channels, 16, 16), jnp.float32),
    ]

    outs = shape_branch_bottleneck(roi_pooled, params)
    outs = [jax.block_until_ready(o) for o in outs]

    refs = reference_forward(roi_pooled, params)
    for o, r in zip(outs, refs):
        np.testing.assert_allclose(np.asarray(o), np.asarray(r), rtol=5e-3, atol=5e-3)

    print("KERNEL_OK")
</pallas_src>

<mosaic_0001>
module attributes {stable_mosaic.version = 11 : i64} {
  func.func @_shape_branch_kernel(%arg0: i32, %arg1: memref<1x16x16x4xbf16, #tpu.memory_space<vmem>>, %arg2: memref<36x256xbf16, #tpu.memory_space<vmem>>, %arg3: memref<1x256xf32, #tpu.memory_space<vmem>>, %arg4: memref<256x1xbf16, #tpu.memory_space<vmem>>, %arg5: memref<1x1xf32, #tpu.memory_space<vmem>>, %arg6: memref<1x1x128xf32, #tpu.memory_space<vmem>>) attributes {dimension_semantics = [#tpu.dimension_semantics<parallel>], iteration_bounds = array<i64: 2>, scalar_prefetch = 0 : i64, scratch_operands = 0 : i64, tpu.core_type = #tpu.core_type<tc>, window_params = [{transform_indices = @transform_0, window_bounds = array<i64: 1, 16, 16, 4>}, {pipeline_mode = #tpu.pipeline_mode<synchronous>, transform_indices = @transform_1, window_bounds = array<i64: 36, 256>}, {pipeline_mode = #tpu.pipeline_mode<synchronous>, transform_indices = @transform_2, window_bounds = array<i64: 1, 256>}, {pipeline_mode = #tpu.pipeline_mode<synchronous>, transform_indices = @transform_3, window_bounds = array<i64: 256, 1>}, {pipeline_mode = #tpu.pipeline_mode<synchronous>, transform_indices = @transform_4, window_bounds = array<i64: 1, 1>}, {transform_indices = @transform_5, window_bounds = array<i64: 1, 1, 128>}]} {
    %c0 = arith.constant 0 : index
    %c0_0 = arith.constant 0 : index
    %c0_1 = arith.constant 0 : index
    %c0_2 = arith.constant 0 : index
    %0 = vector.load %arg1[%c0, %c0_0, %c0_1, %c0_2] : memref<1x16x16x4xbf16, #tpu.memory_space<vmem>>, vector<1x16x16x4xbf16>
    %1 = arith.extf %0 : vector<1x16x16x4xbf16> to vector<1x16x16x4xf32>
    %cst = arith.constant 0.000000e+00 : f32
    %2 = vector.broadcast %cst : f32 to vector<1x16x1x4xf32>
    %3 = tpu.concatenate %2, %1, %2 in 2 : vector<1x16x1x4xf32>, vector<1x16x16x4xf32>, vector<1x16x1x4xf32> -> vector<1x16x18x4xf32>
    %cst_3 = arith.constant 0.000000e+00 : f32
    %4 = vector.broadcast %cst_3 : f32 to vector<1x1x18x4xf32>
    %5 = tpu.concatenate %4, %3, %4 in 1 : vector<1x1x18x4xf32>, vector<1x16x18x4xf32>, vector<1x1x18x4xf32> -> vector<1x18x18x4xf32>
    %6 = vector.extract_strided_slice %5 {offsets = [0, 0, 0, 0], sizes = [1, 16, 16, 4], strides = [1, 1, 1, 1]} : vector<1x18x18x4xf32> to vector<1x16x16x4xf32>
    %7 = vector.extract_strided_slice %5 {offsets = [0, 0, 1, 0], sizes = [1, 16, 16, 4], strides = [1, 1, 1, 1]} : vector<1x18x18x4xf32> to vector<1x16x16x4xf32>
    %8 = vector.extract_strided_slice %5 {offsets = [0, 0, 2, 0], sizes = [1, 16, 16, 4], strides = [1, 1, 1, 1]} : vector<1x18x18x4xf32> to vector<1x16x16x4xf32>
    %9 = vector.extract_strided_slice %5 {offsets = [0, 1, 0, 0], sizes = [1, 16, 16, 4], strides = [1, 1, 1, 1]} : vector<1x18x18x4xf32> to vector<1x16x16x4xf32>
    %10 = vector.extract_strided_slice %5 {offsets = [0, 1, 1, 0], sizes = [1, 16, 16, 4], strides = [1, 1, 1, 1]} : vector<1x18x18x4xf32> to vector<1x16x16x4xf32>
    %11 = vector.extract_strided_slice %5 {offsets = [0, 1, 2, 0], sizes = [1, 16, 16, 4], strides = [1, 1, 1, 1]} : vector<1x18x18x4xf32> to vector<1x16x16x4xf32>
    %12 = vector.extract_strided_slice %5 {offsets = [0, 2, 0, 0], sizes = [1, 16, 16, 4], strides = [1, 1, 1, 1]} : vector<1x18x18x4xf32> to vector<1x16x16x4xf32>
    %13 = vector.extract_strided_slice %5 {offsets = [0, 2, 1, 0], sizes = [1, 16, 16, 4], strides = [1, 1, 1, 1]} : vector<1x18x18x4xf32> to vector<1x16x16x4xf32>
    %14 = vector.extract_strided_slice %5 {offsets = [0, 2, 2, 0], sizes = [1, 16, 16, 4], strides = [1, 1, 1, 1]} : vector<1x18x18x4xf32> to vector<1x16x16x4xf32>
    %15 = tpu.concatenate %6, %7, %8, %9, %10, %11, %12, %13, %14 in 3 : vector<1x16x16x4xf32>, vector<1x16x16x4xf32>, vector<1x16x16x4xf32>, vector<1x16x16x4xf32>, vector<1x16x16x4xf32>, vector<1x16x16x4xf32>, vector<1x16x16x4xf32>, vector<1x16x16x4xf32>, vector<1x16x16x4xf32> -> vector<1x16x16x36xf32>
    %16 = vector.shape_cast %15 : vector<1x16x16x36xf32> to vector<256x36xf32>
    %17 = arith.truncf %16 : vector<256x36xf32> to vector<256x36xbf16>
    %c0_4 = arith.constant 0 : index
    %c0_5 = arith.constant 0 : index
    %18 = vector.load %arg2[%c0_4, %c0_5] : memref<36x256xbf16, #tpu.memory_space<vmem>>, vector<36x256xbf16>
    %cst_6 = arith.constant dense<0.000000e+00> : vector<256x256xf32>
    %19 = tpu.matmul %17, %18, %cst_6 {dimension_numbers = #tpu.dot_dimension_numbers<[1], [0], [0], [1], [0, 0, 1, 1], [], []>} : vector<256x36xbf16>, vector<36x256xbf16>, vector<256x256xf32> -> vector<256x256xf32>
    %c0_7 = arith.constant 0 : index
    %c0_8 = arith.constant 0 : index
    %20 = vector.load %arg3[%c0_7, %c0_8] : memref<1x256xf32, #tpu.memory_space<vmem>>, vector<1x256xf32>
    %21 = vector.broadcast %20 : vector<1x256xf32> to vector<256x256xf32>
    %22 = arith.addf %19, %21 : vector<256x256xf32>
    %cst_9 = arith.constant 0.000000e+00 : f32
    %23 = vector.broadcast %cst_9 : f32 to vector<256x256xf32>
    %24 = arith.maximumf %22, %23 : vector<256x256xf32>
    %25 = arith.truncf %24 : vector<256x256xf32> to vector<256x256xbf16>
    %c0_10 = arith.constant 0 : index
    %c0_11 = arith.constant 0 : index
    %26 = vector.load %arg4[%c0_10, %c0_11] : memref<256x1xbf16, #tpu.memory_space<vmem>>, vector<256x1xbf16>
    %cst_12 = arith.constant dense<0.000000e+00> : vector<256x1xf32>
    %27 = tpu.matmul %25, %26, %cst_12 {dimension_numbers = #tpu.dot_dimension_numbers<[1], [0], [0], [1], [0, 0, 1, 1], [], []>} : vector<256x256xbf16>, vector<256x1xbf16>, vector<256x1xf32> -> vector<256x1xf32>
    %c0_13 = arith.constant 0 : index
    %c0_14 = arith.constant 0 : index
    %28 = vector.load %arg5[%c0_13, %c0_14] : memref<1x1xf32, #tpu.memory_space<vmem>>, vector<1x1xf32>
    %29 = vector.broadcast %28 : vector<1x1xf32> to vector<256x1xf32>
    %30 = arith.addf %27, %29 : vector<256x1xf32>
    %cst_15 = arith.constant 0.000000e+00 : f32
    %31 = vector.broadcast %cst_15 : f32 to vector<256x1xf32>
    %32 = arith.subf %31, %30 : vector<256x1xf32>
    %33 = math.exp %32 : vector<256x1xf32>
    %cst_16 = arith.constant 1.000000e+00 : f32
    %34 = vector.broadcast %cst_16 : f32 to vector<256x1xf32>
    %35 = arith.addf %34, %33 : vector<256x1xf32>
    %36 = tpu.reciprocal %35 {approx = true} : vector<256x1xf32> -> vector<256x1xf32>
    %37 = vector.shape_cast %1 : vector<1x16x16x4xf32> to vector<1x256x4xf32>
    %38 = vector.shape_cast %36 : vector<256x1xf32> to vector<1x256x1xf32>
    %39 = vector.broadcast %38 : vector<1x256x1xf32> to vector<1x256x4xf32>
    %40 = arith.mulf %37, %39 : vector<1x256x4xf32>
    %cst_17 = arith.constant dense<0.000000e+00> : vector<1x4xf32>
    %41 = vector.multi_reduction <add>, %40, %cst_17 [1] : vector<1x256x4xf32> to vector<1x4xf32>
    %cst_18 = arith.constant 3.906250e-03 : f32
    %42 = vector.broadcast %cst_18 : f32 to vector<1x4xf32>
    %43 = arith.mulf %41, %42 : vector<1x4xf32>
    %cst_19 = arith.constant 0.000000e+00 : f32
    %44 = vector.broadcast %cst_19 : f32 to vector<1x124xf32>
    %45 = tpu.concatenate %43, %44 in 1 : vector<1x4xf32>, vector<1x124xf32> -> vector<1x128xf32>
    %46 = vector.shape_cast %45 : vector<1x128xf32> to vector<1x1x128xf32>
    %c0_20 = arith.constant 0 : index
    %c0_21 = arith.constant 0 : index
    %c0_22 = arith.constant 0 : index
    %47 = vector.load %arg6[%c0_20, %c0_21, %c0_22] : memref<1x1x128xf32, #tpu.memory_space<vmem>>, vector<1x1x128xf32>
    tpu.vector_store %arg6[%c0_20, %c0_21, %c0_22], %46 {strides = array<i32>} : memref<1x1x128xf32, #tpu.memory_space<vmem>>, vector<1x1x128xf32>,
    return
  }
  func.func @transform_0(%arg0: i32) -> (i32, i32, i32, i32) {
    %c0_i32 = arith.constant 0 : i32
    %c0_i32_0 = arith.constant 0 : i32
    %c0_i32_1 = arith.constant 0 : i32
    %c0_i32_2 = arith.constant 0 : i32
    return %arg0, %c0_i32, %c0_i32_0, %c0_i32_1 : i32, i32, i32, i32
  }
  func.func @transform_1(%arg0: i32) -> (i32, i32) {
    %c0_i32 = arith.constant 0 : i32
    %c0_i32_0 = arith.constant 0 : i32
    %c0_i32_1 = arith.constant 0 : i32
    return %c0_i32, %c0_i32_0 : i32, i32
  }
  func.func @transform_2(%arg0: i32) -> (i32, i32) {
    %c0_i32 = arith.constant 0 : i32
    %c0_i32_0 = arith.constant 0 : i32
    %c0_i32_1 = arith.constant 0 : i32
    return %c0_i32, %c0_i32_0 : i32, i32
  }
  func.func @transform_3(%arg0: i32) -> (i32, i32) {
    %c0_i32 = arith.constant 0 : i32
    %c0_i32_0 = arith.constant 0 : i32
    %c0_i32_1 = arith.constant 0 : i32
    return %c0_i32, %c0_i32_0 : i32, i32
  }
  func.func @transform_4(%arg0: i32) -> (i32, i32) {
    %c0_i32 = arith.constant 0 : i32
    %c0_i32_0 = arith.constant 0 : i32
    %c0_i32_1 = arith.constant 0 : i32
    return %c0_i32, %c0_i32_0 : i32, i32
  }
  func.func @transform_5(%arg0: i32) -> (i32, i32, i32) {
    %c0_i32 = arith.constant 0 : i32
    %c0_i32_0 = arith.constant 0 : i32
    %c0_i32_1 = arith.constant 0 : i32
    return %arg0, %c0_i32, %c0_i32_0 : i32, i32, i32
  }
}

</mosaic_0001>

<llo_original>
// kernel: _forward_one.1
$region0: #{_forward_one.1}
  #allocation0 [shape = 'u32[]', space=smem, size = 0x4, offset = 0x4, fixed_abs, tag = 'smem constant byte address 0x4 - core index']
  #allocation1 [shape = 'u32[144,128]{1,0:T(1,128)}', space=vmem, size = 0x12000, scoped, tag = 'internal scratch']
  #allocation2 [shape = 'f32[1,1]{1,0:T(1,128)S(1)}', space=vmem, size = 0x200, scoped, tag = 'scoped memory for _forward_one.1']
  %s0 = inlined_call_operand.vmem [shape: bf16[2,16,16,4], index: 0, kind: input, shape index: {}]
  %s1 = inlined_call_operand.vmem [shape: bf16[36,256], index: 1, kind: input, shape index: {}]
  %s2 = inlined_call_operand.vmem [shape: f32[1,256], index: 2, kind: input, shape index: {}]
  %s3 = inlined_call_operand.vmem [shape: bf16[256,1], index: 3, kind: input, shape index: {}]
  %s4 = inlined_call_operand.<no memory space> [shape: f32[1,1], index: 4, kind: input, shape index: {}]
  %s5 = inlined_call_operand.hbm [shape: f32[2,1,128], index: 5, kind: output, shape index: {}]
  %s6 = sld [smem:[#allocation0]]
  $region53: #{_forward_one.1} parent=0
    _
  %s8 = ssub.s32 1, %s6
  %s9 = scalar_select 0, %s8, %s6
  %v10 = vstv %s4
  %11 = vst [vmem:[#allocation2] sm:$0x1] %v10
  $region1: #{_forward_one.1} parent=0
    #allocation3 [shape = 'u8[1024]{0}', space=vmem, size = 0x400, scoped, tag = 'output window, operand 0']
    #allocation4 [shape = 's32[2]{0}', space=sflag, size = 0x8, scoped, tag = 'scoped memory for _forward_one.1']
    %12 = vsyncpa [#allocation4], 0
    %s13 = scalar_lea.sflag [#allocation4], 1
    %14 = vsyncpa %s13, 0
    loop: start=0, step=1, limit=4
    $region2: #{_forward_one.1} parent=1 // loop_pre_header
      _
    $region3: #{_forward_one.1} parent=1 // loop_header
      %s16 = sphi 0, %s20
      %p17 = scmp.ge.s32.totalorder %s16, 4
      %s26 = sphi 0, %s28
      %s29 = sphi 0, %s26
      %s30 = sphi 0, %s29
      %s46 = sphi 0, %s30
      %s50 = sphi 0, %s50
      %s52 = sphi 0, %s50
      %s53 = sphi 0, %s52
      %s67 = sphi 0, %s53
      %s71 = sphi 0, %s71
      %s73 = sphi 0, %s71
      %s74 = sphi 0, %s73
      %s88 = sphi 0, %s74
      %s92 = sphi 0, %s92
      %s94 = sphi 0, %s92
      %s95 = sphi 0, %s94
      %s109 = sphi 0, %s95
      %s113 = sphi 0, %s113
      %s115 = sphi 0, %s113
      %s116 = sphi 0, %s115
      %s130 = sphi 0, %s116
      %s136 = sphi 0, %s138
      %s139 = sphi 0, %s136
      %s140 = sphi 0, %s139
      %s156 = sphi 0, %s140
    $region4: #{_forward_one.1} parent=1 // loop_header_branch
      %19 = sbr.rel (%p17) target = $region8
    $region5: #{_forward_one.1} parent=1 // loop_body
      %s21 = ssub.s32 %s16, 1
      %s22 = ssub.s32 %s16, 2
      %s23 = sadd.s32 %s16, 1
      %s24 = ssub.s32 %s16, %s23
      %p25 = scmp.eq.s32.totalorder %s24, 0
      %s27 = sadd.s32 %s26, 1
      %s28 = scalar_select %p25, %s26, %s27
      %p31 = pneg %p25
      %p32 = scmp.eq.s32.totalorder %s16, 1
      %p33 = por %p31, %p32
      %p34 = scmp.ne.s32.totalorder %s26, %s29
      %p35 = scmp.eq.s32.totalorder %s16, 0
      %p36 = por %p34, %p35
      %p37 = scmp.ne.s32.totalorder %s26, %s29
      %p38 = scmp.eq.s32.totalorder %s21, 1
      %p39 = por %p37, %p38
      %p40 = scmp.ne.s32.totalorder %s29, %s30
      %p41 = scmp.eq.s32.totalorder %s21, 0
      %p42 = por %p40, %p41
      %p43 = scmp.ne.s32.totalorder %s29, %s30
      %p44 = scmp.eq.s32.totalorder %s22, 1
      %p45 = por %p43, %p44
      %p47 = scmp.ne.s32.totalorder %s30, %s46
      %p48 = scmp.eq.s32.totalorder %s22, 0
      %p49 = por %p47, %p48
      %s51 = sadd.s32 %s50, 1
      %p54 = scmp.eq.s32.totalorder %s16, 1
      %p55 = scmp.ne.s32.totalorder %s50, %s52
      %p56 = scmp.eq.s32.totalorder %s16, 0
      %p57 = por %p55, %p56
      %p58 = scmp.ne.s32.totalorder %s50, %s52
      %p59 = scmp.eq.s32.totalorder %s21, 1
      %p60 = por %p58, %p59
      %p61 = scmp.ne.s32.totalorder %s52, %s53
      %p62 = scmp.eq.s32.totalorder %s21, 0
      %p63 = por %p61, %p62
      %p64 = scmp.ne.s32.totalorder %s52, %s53
      %p65 = scmp.eq.s32.totalorder %s22, 1
      %p66 = por %p64, %p65
      %p68 = scmp.ne.s32.totalorder %s53, %s67
      %p69 = scmp.eq.s32.totalorder %s22, 0
      %p70 = por %p68, %p69
      %s72 = sadd.s32 %s71, 1
      %p75 = scmp.eq.s32.totalorder %s16, 1
      %p76 = scmp.ne.s32.totalorder %s71, %s73
      %p77 = scmp.eq.s32.totalorder %s16, 0
      %p78 = por %p76, %p77
      %p79 = scmp.ne.s32.totalorder %s71, %s73
      %p80 = scmp.eq.s32.totalorder %s21, 1
      %p81 = por %p79, %p80
      %p82 = scmp.ne.s32.totalorder %s73, %s74
      %p83 = scmp.eq.s32.totalorder %s21, 0
      %p84 = por %p82, %p83
      %p85 = scmp.ne.s32.totalorder %s73, %s74
      %p86 = scmp.eq.s32.totalorder %s22, 1
      %p87 = por %p85, %p86
      %p89 = scmp.ne.s32.totalorder %s74, %s88
      %p90 = scmp.eq.s32.totalorder %s22, 0
      %p91 = por %p89, %p90
      %s93 = sadd.s32 %s92, 1
      %p96 = scmp.eq.s32.totalorder %s16, 1
      %p97 = scmp.ne.s32.totalorder %s92, %s94
      %p98 = scmp.eq.s32.totalorder %s16, 0
      %p99 = por %p97, %p98
      %p100 = scmp.ne.s32.totalorder %s92, %s94
      %p101 = scmp.eq.s32.totalorder %s21, 1
      %p102 = por %p100, %p101
      %p103 = scmp.ne.s32.totalorder %s94, %s95
      %p104 = scmp.eq.s32.totalorder %s21, 0
      %p105 = por %p103, %p104
      %p106 = scmp.ne.s32.totalorder %s94, %s95
      %p107 = scmp.eq.s32.totalorder %s22, 1
      %p108 = por %p106, %p107
      %p110 = scmp.ne.s32.totalorder %s95, %s109
      %p111 = scmp.eq.s32.totalorder %s22, 0
      %p112 = por %p110, %p111
      %s114 = sadd.s32 %s113, 1
      %p117 = scmp.eq.s32.totalorder %s16, 1
      %p118 = scmp.ne.s32.totalorder %s113, %s115
      %p119 = scmp.eq.s32.totalorder %s16, 0
      %p120 = por %p118, %p119
      %p121 = scmp.ne.s32.totalorder %s113, %s115
      %p122 = scmp.eq.s32.totalorder %s21, 1
      %p123 = por %p121, %p122
      %p124 = scmp.ne.s32.totalorder %s115, %s116
      %p125 = scmp.eq.s32.totalorder %s21, 0
      %p126 = por %p124, %p125
      %p127 = scmp.ne.s32.totalorder %s115, %s116
      %p128 = scmp.eq.s32.totalorder %s22, 1
      %p129 = por %p127, %p128
      %p131 = scmp.ne.s32.totalorder %s116, %s130
      %p132 = scmp.eq.s32.totalorder %s22, 0
      %p133 = por %p131, %p132
      %s134 = ssub.s32 %s16, %s23
      %p135 = scmp.eq.s32.totalorder %s134, 0
      %s137 = sadd.s32 %s136, 1
      %s138 = scalar_select %p135, %s136, %s137
      %p141 = pneg %p135
      %p142 = scmp.eq.s32.totalorder %s16, 1
      %p143 = por %p141, %p142
      %p144 = scmp.ne.s32.totalorder %s136, %s139
      %p145 = scmp.eq.s32.totalorder %s16, 0
      %p146 = por %p144, %p145
      %p147 = scmp.ne.s32.totalorder %s136, %s139
      %p148 = scmp.eq.s32.totalorder %s21, 1
      %p149 = por %p147, %p148
      %p150 = scmp.ne.s32.totalorder %s139, %s140
      %p151 = scmp.eq.s32.totalorder %s21, 0
      %p152 = por %p150, %p151
      %p153 = scmp.ne.s32.totalorder %s139, %s140
      %p154 = scmp.eq.s32.totalorder %s22, 1
      %p155 = por %p153, %p154
      %p157 = scmp.ne.s32.totalorder %s140, %s156
      %p158 = scmp.eq.s32.totalorder %s22, 0
      %p159 = por %p157, %p158
      %p160 = scmp.le.s32.totalorder 1, %s16
      %p161 = scmp.lt.s32.totalorder %s16, 3
      %p162 = pnand %p160, %p161
      %p163 = pneg %p162
      // Predicated region
      $region9: #{_forward_one.1} parent=5 // pred_check
        _
      $region10: #{_forward_one.1} parent=5 // pred_check_branch
        %165 = sbr.rel (%p162) target = $region12
      $region11: #{_forward_one.1} parent=5 // pred_region
        %s166 = ssub.s32 %s16, 1
        // Predicated region
        $region13: #{_forward_one.1} parent=11 // pred_check
          %p167 = pneg %p63
        $region14: #{_forward_one.1} parent=11 // pred_check_branch
          %169 = sbr.rel (%p167) target = $region16
        $region15: #{_forward_one.1} parent=11 // pred_region
          _
        $region16: #{_forward_one.1} parent=11 // pred_fallthru
          _
        // Predicated region
        $region17: #{_forward_one.1} parent=11 // pred_check
          %p170 = pneg %p84
        $region18: #{_forward_one.1} parent=11 // pred_check_branch
          %172 = sbr.rel (%p170) target = $region20
        $region19: #{_forward_one.1} parent=11 // pred_region
          _
        $region20: #{_forward_one.1} parent=11 // pred_fallthru
          _
        // Predicated region
        $region21: #{_forward_one.1} parent=11 // pred_check
          %p173 = pneg %p105
        $region22: #{_forward_one.1} parent=11 // pred_check_branch
          %175 = sbr.rel (%p173) target = $region24
        $region23: #{_forward_one.1} parent=11 // pred_region
          _
        $region24: #{_forward_one.1} parent=11 // pred_fallthru
          _
        // Predicated region
        $region25: #{_forward_one.1} parent=11 // pred_check
          %p176 = pneg %p126
        $region26: #{_forward_one.1} parent=11 // pred_check_branch
          %178 = sbr.rel (%p176) target = $region28
        $region27: #{_forward_one.1} parent=11 // pred_region
          _
        $region28: #{_forward_one.1} parent=11 // pred_fallthru
          _
      $region12: #{_forward_one.1} parent=5 // pred_fallthru
        _
      %p179 = scmp.lt.s32.totalorder %s16, 2
      // Predicated region
      $region29: #{_forward_one.1} parent=5 // pred_check
        %p180 = pneg %p179
      $region30: #{_forward_one.1} parent=5 // pred_check_branch
        %182 = sbr.rel (%p180) target = $region32
      $region31: #{_forward_one.1} parent=5 // pred_region
        // Predicated region
        $region33: #{_forward_one.1} parent=31 // pred_check
          %p183 = pneg %p36
        $region34: #{_forward_one.1} parent=31 // pred_check_branch
          %185 = sbr.rel (%p183) target = $region36
        $region35: #{_forward_one.1} parent=31 // pred_region
          %p186 = scmp.lt.s32.totalorder %s16, 1
          %s187 = scalar_select %p186, %s16, 1
          %s188 = smul.addr %s187, 32
          %s189 = smul.addr %s188, 4
          %s190 = scalar_lea.vmem %s0, %s189
        $region36: #{_forward_one.1} parent=31 // pred_fallthru
          _
      $region32: #{_forward_one.1} parent=5 // pred_fallthru
        _
      %p191 = scmp.le.s32.totalorder 1, %s16
      %p192 = scmp.lt.s32.totalorder %s16, 3
      %p193 = pnand %p191, %p192
      %p194 = pneg %p193
      // Predicated region
      $region37: #{_forward_one.1} parent=5 // pred_check
        _
      $region38: #{_forward_one.1} parent=5 // pred_check_branch
        %196 = sbr.rel (%p193) target = $region40
      $region39: #{_forward_one.1} parent=5 // pred_region
        %s197 = ssub.s32 %s16, 1
        %p198 = scmp.lt.s32.totalorder %s21, 1
        %s199 = scalar_select %p198, %s21, 1
        %s200 = smul.addr %s199, 32
        %s201 = smul.addr %s200, 4
        %s202 = scalar_lea.vmem %s0, %s201
        %p203 = pneg %p42
        %p204 = pneg %p39
        %p205 = pneg %p63
        %p206 = pneg %p60
        %p207 = pneg %p84
        %p208 = pneg %p81
        %p209 = pneg %p105
        %p210 = pneg %p102
        %p211 = pneg %p126
        %p212 = pneg %p123
        %p213 = pneg %p152
        %p214 = pneg %p149
        %s215 = sand.u32 %s139, 1
        %s216 = scalar_lea.sflag [#allocation4], %s215
        %s217 = sand.u32 %s139, 1
        %s218 = scalar_lea.vmem [#allocation3], %s217
        %p219 = scmp.lt.s32.totalorder %s21, 1
        %s220 = scalar_select %p219, %s21, 1
        %s221 = smul.addr %s220, 32
        %s222 = smul.addr %s221, 4
        %s223 = scalar_lea.vmem %s0, %s222
        %v225 = vld [vmem:[%s223] sm:$0xf]
        %v226 = vld [vmem:[%s223 + $0x4] sm:$0xf]
        %v227 = vld [vmem:[%s223 + $0x8] sm:$0xf]
        %v228 = vld [vmem:[%s223 + $0xc] sm:$0xf]
        %v229 = vld [vmem:[%s223 + $0x10] sm:$0xf]
        %v230 = vld [vmem:[%s223 + $0x14] sm:$0xf]
        %v231 = vld [vmem:[%s223 + $0x18] sm:$0xf]
        %v232 = vld [vmem:[%s223 + $0x1c] sm:$0xf]
        %v233 = vld [vmem:[%s223 + $0x20] sm:$0xf]
        %v234 = vld [vmem:[%s223 + $0x24] sm:$0xf]
        %v235 = vld [vmem:[%s223 + $0x28] sm:$0xf]
        %v236 = vld [vmem:[%s223 + $0x2c] sm:$0xf]
        %v237 = vld [vmem:[%s223 + $0x30] sm:$0xf]
        %v238 = vld [vmem:[%s223 + $0x34] sm:$0xf]
        %v239 = vld [vmem:[%s223 + $0x38] sm:$0xf]
        %v240 = vld [vmem:[%s223 + $0x3c] sm:$0xf]
        %v241 = vld [vmem:[%s223 + $0x40] sm:$0xf]
        %v242 = vld [vmem:[%s223 + $0x44] sm:$0xf]
        %v243 = vld [vmem:[%s223 + $0x48] sm:$0xf]
        %v244 = vld [vmem:[%s223 + $0x4c] sm:$0xf]
        %v245 = vld [vmem:[%s223 + $0x50] sm:$0xf]
        %v246 = vld [vmem:[%s223 + $0x54] sm:$0xf]
        %v247 = vld [vmem:[%s223 + $0x58] sm:$0xf]
        %v248 = vld [vmem:[%s223 + $0x5c] sm:$0xf]
        %v249 = vld [vmem:[%s223 + $0x60] sm:$0xf]
        %v250 = vld [vmem:[%s223 + $0x64] sm:$0xf]
        %v251 = vld [vmem:[%s223 + $0x68] sm:$0xf]
        %v252 = vld [vmem:[%s223 + $0x6c] sm:$0xf]
        %v253 = vld [vmem:[%s223 + $0x70] sm:$0xf]
        %v254 = vld [vmem:[%s223 + $0x74] sm:$0xf]
        %v255 = vld [vmem:[%s223 + $0x78] sm:$0xf]
        %v256 = vld [vmem:[%s223 + $0x7c] sm:$0xf]
        %v257 = vunpack.c.l.bf16 %v225
        %v258 = vunpack.c.l.bf16 %v226
        %v259 = vunpack.c.l.bf16 %v227
        %v260 = vunpack.c.l.bf16 %v228
        %v261 = vunpack.c.l.bf16 %v229
        %v262 = vunpack.c.l.bf16 %v230
        %v263 = vunpack.c.l.bf16 %v231
        %v264 = vunpack.c.l.bf16 %v232
        %v265 = vunpack.c.l.bf16 %v233
        %v266 = vunpack.c.l.bf16 %v234
        %v267 = vunpack.c.l.bf16 %v235
        %v268 = vunpack.c.l.bf16 %v236
        %v269 = vunpack.c.l.bf16 %v237
        %v270 = vunpack.c.l.bf16 %v238
        %v271 = vunpack.c.l.bf16 %v239
        %v272 = vunpack.c.l.bf16 %v240
        %v273 = vunpack.c.l.bf16 %v241
        %v274 = vunpack.c.l.bf16 %v242
        %v275 = vunpack.c.l.bf16 %v243
        %v276 = vunpack.c.l.bf16 %v244
        %v277 = vunpack.c.l.bf16 %v245
        %v278 = vunpack.c.l.bf16 %v246
        %v279 = vunpack.c.l.bf16 %v247
        %v280 = vunpack.c.l.bf16 %v248
        %v281 = vunpack.c.l.bf16 %v249
        %v282 = vunpack.c.l.bf16 %v250
        %v283 = vunpack.c.l.bf16 %v251
        %v284 = vunpack.c.l.bf16 %v252
        %v285 = vunpack.c.l.bf16 %v253
        %v286 = vunpack.c.l.bf16 %v254
        %v287 = vunpack.c.l.bf16 %v255
        %v288 = vunpack.c.l.bf16 %v256
        %vm321 = vcmask 1040384
        %v322 = vrot.slane %v257, 7
        %v323 = vrot.slane %v258, 7
        %v324 = vsel %vm321, %v322, %v323
        %v325 = vrot.slane %v259, 7
        %v326 = vrot.slane %v260, 7
        %v327 = vsel %vm321, %v325, %v326
        %v328 = vrot.slane %v261, 7
        %v329 = vrot.slane %v262, 7
        %v330 = vsel %vm321, %v328, %v329
        %v331 = vrot.slane %v263, 7
        %v332 = vrot.slane %v264, 7
        %v333 = vsel %vm321, %v331, %v332
        %v334 = vrot.slane %v265, 7
        %v335 = vrot.slane %v266, 7
        %v336 = vsel %vm321, %v334, %v335
        %v337 = vrot.slane %v267, 7
        %v338 = vrot.slane %v268, 7
        %v339 = vsel %vm321, %v337, %v338
        %v340 = vrot.slane %v269, 7
        %v341 = vrot.slane %v270, 7
        %v342 = vsel %vm321, %v340, %v341
        %v343 = vrot.slane %v271, 7
        %v344 = vrot.slane %v272, 7
        %v345 = vsel %vm321, %v343, %v344
        %v346 = vrot.slane %v273, 7
        %v347 = vrot.slane %v274, 7
        %v348 = vsel %vm321, %v346, %v347
        %v349 = vrot.slane %v275, 7
        %v350 = vrot.slane %v276, 7
        %v351 = vsel %vm321, %v349, %v350
        %v352 = vrot.slane %v277, 7
        %v353 = vrot.slane %v278, 7
        %v354 = vsel %vm321, %v352, %v353
        %v355 = vrot.slane %v279, 7
        %v356 = vrot.slane %v280, 7
        %v357 = vsel %vm321, %v355, %v356
        %v358 = vrot.slane %v281, 7
        %v359 = vrot.slane %v282, 7
        %v360 = vsel %vm321, %v358, %v359
        %v361 = vrot.slane %v283, 7
        %v362 = vrot.slane %v284, 7
        %v363 = vsel %vm321, %v361, %v362
        %v364 = vrot.slane %v285, 7
        %v365 = vrot.slane %v286, 7
        %v366 = vsel %vm321, %v364, %v365
        %v367 = vrot.slane %v287, 7
        %v368 = vrot.slane %v288, 7
        %v369 = vsel %vm321, %v367, %v368
        %v417 = vsel %vm321, 0.0, %v322
        %v418 = vsel %vm321, 0.0, %v325
        %v419 = vsel %vm321, 0.0, %v328
        %v420 = vsel %vm321, 0.0, %v331
        %v421 = vsel %vm321, 0.0, %v334
        %v422 = vsel %vm321, 0.0, %v337
        %v423 = vsel %vm321, 0.0, %v340
        %v424 = vsel %vm321, 0.0, %v343
        %v425 = vsel %vm321, 0.0, %v346
        %v426 = vsel %vm321, 0.0, %v349
        %v427 = vsel %vm321, 0.0, %v352
        %v428 = vsel %vm321, 0.0, %v355
        %v429 = vsel %vm321, 0.0, %v358
        %v430 = vsel %vm321, 0.0, %v361
        %v431 = vsel %vm321, 0.0, %v364
        %v432 = vsel %vm321, 0.0, %v367
        %v433 = vsel %vm321, %v323, 0.0
        %v434 = vsel %vm321, %v326, 0.0
        %v435 = vsel %vm321, %v329, 0.0
        %v436 = vsel %vm321, %v332, 0.0
        %v437 = vsel %vm321, %v335, 0.0
        %v438 = vsel %vm321, %v338, 0.0
        %v439 = vsel %vm321, %v341, 0.0
        %v440 = vsel %vm321, %v344, 0.0
        %v441 = vsel %vm321, %v347, 0.0
        %v442 = vsel %vm321, %v350, 0.0
        %v443 = vsel %vm321, %v353, 0.0
        %v444 = vsel %vm321, %v356, 0.0
        %v445 = vsel %vm321, %v359, 0.0
        %v446 = vsel %vm321, %v362, 0.0
        %v447 = vsel %vm321, %v365, 0.0
        %v448 = vsel %vm321, %v368, 0.0
        %vm480 = vcmask 1046528
        %v481 = vrot.slane 0.0, 1
        %v482 = vsel %vm480, %v481, %v481
        %v483 = vrot.slane %v417, 1
        %v484 = vrot.slane %v324, 1
        %v485 = vsel %vm480, %v483, %v484
        %v486 = vrot.slane %v433, 1
        %v487 = vsel %vm480, %v484, %v486
        %v488 = vrot.slane %v418, 1
        %v489 = vrot.slane %v327, 1
        %v490 = vsel %vm480, %v488, %v489
        %v491 = vrot.slane %v434, 1
        %v492 = vsel %vm480, %v489, %v491
        %v493 = vrot.slane %v419, 1
        %v494 = vrot.slane %v330, 1
        %v495 = vsel %vm480, %v493, %v494
        %v496 = vrot.slane %v435, 1
        %v497 = vsel %vm480, %v494, %v496
        %v498 = vrot.slane %v420, 1
        %v499 = vrot.slane %v333, 1
        %v500 = vsel %vm480, %v498, %v499
        %v501 = vrot.slane %v436, 1
        %v502 = vsel %vm480, %v499, %v501
        %v503 = vrot.slane %v421, 1
        %v504 = vrot.slane %v336, 1
        %v505 = vsel %vm480, %v503, %v504
        %v506 = vrot.slane %v437, 1
        %v507 = vsel %vm480, %v504, %v506
        %v508 = vrot.slane %v422, 1
        %v509 = vrot.slane %v339, 1
        %v510 = vsel %vm480, %v508, %v509
        %v511 = vrot.slane %v438, 1
        %v512 = vsel %vm480, %v509, %v511
        %v513 = vrot.slane %v423, 1
        %v514 = vrot.slane %v342, 1
        %v515 = vsel %vm480, %v513, %v514
        %v516 = vrot.slane %v439, 1
        %v517 = vsel %vm480, %v514, %v516
        %v518 = vrot.slane %v424, 1
        %v519 = vrot.slane %v345, 1
        %v520 = vsel %vm480, %v518, %v519
        %v521 = vrot.slane %v440, 1
        %v522 = vsel %vm480, %v519, %v521
        %v523 = vrot.slane %v425, 1
        %v524 = vrot.slane %v348, 1
        %v525 = vsel %vm480, %v523, %v524
        %v526 = vrot.slane %v441, 1
        %v527 = vsel %vm480, %v524, %v526
        %v528 = vrot.slane %v426, 1
        %v529 = vrot.slane %v351, 1
        %v530 = vsel %vm480, %v528, %v529
        %v531 = vrot.slane %v442, 1
        %v532 = vsel %vm480, %v529, %v531
        %v533 = vrot.slane %v427, 1
        %v534 = vrot.slane %v354, 1
        %v535 = vsel %vm480, %v533, %v534
        %v536 = vrot.slane %v443, 1
        %v537 = vsel %vm480, %v534, %v536
        %v538 = vrot.slane %v428, 1
        %v539 = vrot.slane %v357, 1
        %v540 = vsel %vm480, %v538, %v539
        %v541 = vrot.slane %v444, 1
        %v542 = vsel %vm480, %v539, %v541
        %v543 = vrot.slane %v429, 1
        %v544 = vrot.slane %v360, 1
        %v545 = vsel %vm480, %v543, %v544
        %v546 = vrot.slane %v445, 1
        %v547 = vsel %vm480, %v544, %v546
        %v548 = vrot.slane %v430, 1
        %v549 = vrot.slane %v363, 1
        %v550 = vsel %vm480, %v548, %v549
        %v551 = vrot.slane %v446, 1
        %v552 = vsel %vm480, %v549, %v551
        %v553 = vrot.slane %v431, 1
        %v554 = vrot.slane %v366, 1
        %v555 = vsel %vm480, %v553, %v554
        %v556 = vrot.slane %v447, 1
        %v557 = vsel %vm480, %v554, %v556
        %558 = vrot.lane.b32.xlu0 %v482, 4
        %v559 = vpop.permute.xlu0 %558
        %560 = vrot.lane.b32.xlu0 %v485, 4
        %v561 = vpop.permute.xlu0 %560
        %562 = vrot.lane.b32.xlu0 %v487, 4
        %v563 = vpop.permute.xlu0 %562
        %564 = vrot.lane.b32.xlu0 %v490, 4
        %v565 = vpop.permute.xlu0 %564
        %566 = vrot.lane.b32.xlu0 %v492, 4
        %v567 = vpop.permute.xlu0 %566
        %568 = vrot.lane.b32.xlu0 %v495, 4
        %v569 = vpop.permute.xlu0 %568
        %570 = vrot.lane.b32.xlu0 %v497, 4
        %v571 = vpop.permute.xlu0 %570
        %572 = vrot.lane.b32.xlu0 %v500, 4
        %v573 = vpop.permute.xlu0 %572
        %574 = vrot.lane.b32.xlu0 %v502, 4
        %v575 = vpop.permute.xlu0 %574
        %576 = vrot.lane.b32.xlu0 %v505, 4
        %v577 = vpop.permute.xlu0 %576
        %578 = vrot.lane.b32.xlu0 %v507, 4
        %v579 = vpop.permute.xlu0 %578
        %580 = vrot.lane.b32.xlu0 %v510, 4
        %v581 = vpop.permute.xlu0 %580
        %582 = vrot.lane.b32.xlu0 %v512, 4
        %v583 = vpop.permute.xlu0 %582
        %584 = vrot.lane.b32.xlu0 %v515, 4
        %v585 = vpop.permute.xlu0 %584
        %586 = vrot.lane.b32.xlu0 %v517, 4
        %v587 = vpop.permute.xlu0 %586
        %588 = vrot.lane.b32.xlu0 %v520, 4
        %v589 = vpop.permute.xlu0 %588
        %590 = vrot.lane.b32.xlu0 %v522, 4
        %v591 = vpop.permute.xlu0 %590
        %592 = vrot.lane.b32.xlu0 %v525, 4
        %v593 = vpop.permute.xlu0 %592
        %594 = vrot.lane.b32.xlu0 %v527, 4
        %v595 = vpop.permute.xlu0 %594
        %596 = vrot.lane.b32.xlu0 %v530, 4
        %v597 = vpop.permute.xlu0 %596
        %598 = vrot.lane.b32.xlu0 %v532, 4
        %v599 = vpop.permute.xlu0 %598
        %600 = vrot.lane.b32.xlu0 %v535, 4
        %v601 = vpop.permute.xlu0 %600
        %602 = vrot.lane.b32.xlu0 %v537, 4
        %v603 = vpop.permute.xlu0 %602
        %604 = vrot.lane.b32.xlu0 %v540, 4
        %v605 = vpop.permute.xlu0 %604
        %606 = vrot.lane.b32.xlu0 %v542, 4
        %v607 = vpop.permute.xlu0 %606
        %608 = vrot.lane.b32.xlu0 %v545, 4
        %v609 = vpop.permute.xlu0 %608
        %610 = vrot.lane.b32.xlu0 %v547, 4
        %v611 = vpop.permute.xlu0 %610
        %612 = vrot.lane.b32.xlu0 %v550, 4
        %v613 = vpop.permute.xlu0 %612
        %614 = vrot.lane.b32.xlu0 %v552, 4
        %v615 = vpop.permute.xlu0 %614
        %616 = vrot.lane.b32.xlu0 %v555, 4
        %v617 = vpop.permute.xlu0 %616
        %618 = vrot.lane.b32.xlu0 %v557, 4
        %v619 = vpop.permute.xlu0 %618
        %vm651 = vcmask 1045504
        %v652 = vrot.slane 0.0, 2
        %v653 = vsel %vm651, %v652, %v652
        %v654 = vrot.slane %v417, 2
        %v655 = vrot.slane %v324, 2
        %v656 = vsel %vm651, %v654, %v655
        %v657 = vrot.slane %v433, 2
        %v658 = vsel %vm651, %v655, %v657
        %v659 = vrot.slane %v418, 2
        %v660 = vrot.slane %v327, 2
        %v661 = vsel %vm651, %v659, %v660
        %v662 = vrot.slane %v434, 2
        %v663 = vsel %vm651, %v660, %v662
        %v664 = vrot.slane %v419, 2
        %v665 = vrot.slane %v330, 2
        %v666 = vsel %vm651, %v664, %v665
        %v667 = vrot.slane %v435, 2
        %v668 = vsel %vm651, %v665, %v667
        %v669 = vrot.slane %v420, 2
        %v670 = vrot.slane %v333, 2
        %v671 = vsel %vm651, %v669, %v670
        %v672 = vrot.slane %v436, 2
        %v673 = vsel %vm651, %v670, %v672
        %v674 = vrot.slane %v421, 2
        %v675 = vrot.slane %v336, 2
        %v676 = vsel %vm651, %v674, %v675
        %v677 = vrot.slane %v437, 2
        %v678 = vsel %vm651, %v675, %v677
        %v679 = vrot.slane %v422, 2
        %v680 = vrot.slane %v339, 2
        %v681 = vsel %vm651, %v679, %v680
        %v682 = vrot.slane %v438, 2
        %v683 = vsel %vm651, %v680, %v682
        %v684 = vrot.slane %v423, 2
        %v685 = vrot.slane %v342, 2
        %v686 = vsel %vm651, %v684, %v685
        %v687 = vrot.slane %v439, 2
        %v688 = vsel %vm651, %v685, %v687
        %v689 = vrot.slane %v424, 2
        %v690 = vrot.slane %v345, 2
        %v691 = vsel %vm651, %v689, %v690
        %v692 = vrot.slane %v440, 2
        %v693 = vsel %vm651, %v690, %v692
        %v694 = vrot.slane %v425, 2
        %v695 = vrot.slane %v348, 2
        %v696 = vsel %vm651, %v694, %v695
        %v697 = vrot.slane %v441, 2
        %v698 = vsel %vm651, %v695, %v697
        %v699 = vrot.slane %v426, 2
        %v700 = vrot.slane %v351, 2
        %v701 = vsel %vm651, %v699, %v700
        %v702 = vrot.slane %v442, 2
        %v703 = vsel %vm651, %v700, %v702
        %v704 = vrot.slane %v427, 2
        %v705 = vrot.slane %v354, 2
        %v706 = vsel %vm651, %v704, %v705
        %v707 = vrot.slane %v443, 2
        %v708 = vsel %vm651, %v705, %v707
        %v709 = vrot.slane %v428, 2
        %v710 = vrot.slane %v357, 2
        %v711 = vsel %vm651, %v709, %v710
        %v712 = vrot.slane %v444, 2
        %v713 = vsel %vm651, %v710, %v712
        %v714 = vrot.slane %v429, 2
        %v715 = vrot.slane %v360, 2
        %v716 = vsel %vm651, %v714, %v715
        %v717 = vrot.slane %v445, 2
        %v718 = vsel %vm651, %v715, %v717
        %v719 = vrot.slane %v430, 2
        %v720 = vrot.slane %v363, 2
        %v721 = vsel %vm651, %v719, %v720
        %v722 = vrot.slane %v446, 2
        %v723 = vsel %vm651, %v720, %v722
        %v724 = vrot.slane %v431, 2
        %v725 = vrot.slane %v366, 2
        %v726 = vsel %vm651, %v724, %v725
        %v727 = vrot.slane %v447, 2
        %v728 = vsel %vm651, %v725, %v727
        %729 = vrot.lane.b32.xlu0 %v653, 8
        %v730 = vpop.permute.xlu0 %729
        %731 = vrot.lane.b32.xlu0 %v656, 8
        %v732 = vpop.permute.xlu0 %731
        %733 = vrot.lane.b32.xlu0 %v658, 8
        %v734 = vpop.permute.xlu0 %733
        %735 = vrot.lane.b32.xlu0 %v661, 8
        %v736 = vpop.permute.xlu0 %735
        %737 = vrot.lane.b32.xlu0 %v663, 8
        %v738 = vpop.permute.xlu0 %737
        %739 = vrot.lane.b32.xlu0 %v666, 8
        %v740 = vpop.permute.xlu0 %739
        %741 = vrot.lane.b32.xlu0 %v668, 8
        %v742 = vpop.permute.xlu0 %741
        %743 = vrot.lane.b32.xlu0 %v671, 8
        %v744 = vpop.permute.xlu0 %743
        %745 = vrot.lane.b32.xlu0 %v673, 8
        %v746 = vpop.permute.xlu0 %745
        %747 = vrot.lane.b32.xlu0 %v676, 8
        %v748 = vpop.permute.xlu0 %747
        %749 = vrot.lane.b32.xlu0 %v678, 8
        %v750 = vpop.permute.xlu0 %749
        %751 = vrot.lane.b32.xlu0 %v681, 8
        %v752 = vpop.permute.xlu0 %751
        %753 = vrot.lane.b32.xlu0 %v683, 8
        %v754 = vpop.permute.xlu0 %753
        %755 = vrot.lane.b32.xlu0 %v686, 8
        %v756 = vpop.permute.xlu0 %755
        %757 = vrot.lane.b32.xlu0 %v688, 8
        %v758 = vpop.permute.xlu0 %757
        %759 = vrot.lane.b32.xlu0 %v691, 8
        %v760 = vpop.permute.xlu0 %759
        %761 = vrot.lane.b32.xlu0 %v693, 8
        %v762 = vpop.permute.xlu0 %761
        %763 = vrot.lane.b32.xlu0 %v696, 8
        %v764 = vpop.permute.xlu0 %763
        %765 = vrot.lane.b32.xlu0 %v698, 8
        %v766 = vpop.permute.xlu0 %765
        %767 = vrot.lane.b32.xlu0 %v701, 8
        %v768 = vpop.permute.xlu0 %767
        %769 = vrot.lane.b32.xlu0 %v703, 8
        %v770 = vpop.permute.xlu0 %769
        %771 = vrot.lane.b32.xlu0 %v706, 8
        %v772 = vpop.permute.xlu0 %771
        %773 = vrot.lane.b32.xlu0 %v708, 8
        %v774 = vpop.permute.xlu0 %773
        %775 = vrot.lane.b32.xlu0 %v711, 8
        %v776 = vpop.permute.xlu0 %775
        %777 = vrot.lane.b32.xlu0 %v713, 8
        %v778 = vpop.permute.xlu0 %777
        %779 = vrot.lane.b32.xlu0 %v716, 8
        %v780 = vpop.permute.xlu0 %779
        %781 = vrot.lane.b32.xlu0 %v718, 8
        %v782 = vpop.permute.xlu0 %781
        %783 = vrot.lane.b32.xlu0 %v721, 8
        %v784 = vpop.permute.xlu0 %783
        %785 = vrot.lane.b32.xlu0 %v723, 8
        %v786 = vpop.permute.xlu0 %785
        %787 = vrot.lane.b32.xlu0 %v726, 8
        %v788 = vpop.permute.xlu0 %787
        %789 = vrot.lane.b32.xlu0 %v728, 8
        %v790 = vpop.permute.xlu0 %789
        %823 = vrot.lane.b32.xlu0 %v417, 12
        %v824 = vpop.permute.xlu0 %823
        %825 = vrot.lane.b32.xlu0 %v324, 12
        %v826 = vpop.permute.xlu0 %825
        %827 = vrot.lane.b32.xlu0 %v418, 12
        %v828 = vpop.permute.xlu0 %827
        %829 = vrot.lane.b32.xlu0 %v327, 12
        %v830 = vpop.permute.xlu0 %829
        %831 = vrot.lane.b32.xlu0 %v419, 12
        %v832 = vpop.permute.xlu0 %831
        %833 = vrot.lane.b32.xlu0 %v330, 12
        %v834 = vpop.permute.xlu0 %833
        %835 = vrot.lane.b32.xlu0 %v420, 12
        %v836 = vpop.permute.xlu0 %835
        %837 = vrot.lane.b32.xlu0 %v333, 12
        %v838 = vpop.permute.xlu0 %837
        %839 = vrot.lane.b32.xlu0 %v421, 12
        %v840 = vpop.permute.xlu0 %839
        %841 = vrot.lane.b32.xlu0 %v336, 12
        %v842 = vpop.permute.xlu0 %841
        %843 = vrot.lane.b32.xlu0 %v422, 12
        %v844 = vpop.permute.xlu0 %843
        %845 = vrot.lane.b32.xlu0 %v339, 12
        %v846 = vpop.permute.xlu0 %845
        %847 = vrot.lane.b32.xlu0 %v423, 12
        %v848 = vpop.permute.xlu0 %847
        %849 = vrot.lane.b32.xlu0 %v342, 12
        %v850 = vpop.permute.xlu0 %849
        %851 = vrot.lane.b32.xlu0 %v424, 12
        %v852 = vpop.permute.xlu0 %851
        %853 = vrot.lane.b32.xlu0 %v345, 12
        %v854 = vpop.permute.xlu0 %853
        %855 = vrot.lane.b32.xlu0 %v425, 12
        %v856 = vpop.permute.xlu0 %855
        %857 = vrot.lane.b32.xlu0 %v348, 12
        %v858 = vpop.permute.xlu0 %857
        %859 = vrot.lane.b32.xlu0 %v426, 12
        %v860 = vpop.permute.xlu0 %859
        %861 = vrot.lane.b32.xlu0 %v351, 12
        %v862 = vpop.permute.xlu0 %861
        %863 = vrot.lane.b32.xlu0 %v427, 12
        %v864 = vpop.permute.xlu0 %863
        %865 = vrot.lane.b32.xlu0 %v354, 12
        %v866 = vpop.permute.xlu0 %865
        %867 = vrot.lane.b32.xlu0 %v428, 12
        %v868 = vpop.permute.xlu0 %867
        %869 = vrot.lane.b32.xlu0 %v357, 12
        %v870 = vpop.permute.xlu0 %869
        %871 = vrot.lane.b32.xlu0 %v429, 12
        %v872 = vpop.permute.xlu0 %871
        %873 = vrot.lane.b32.xlu0 %v360, 12
        %v874 = vpop.permute.xlu0 %873
        %875 = vrot.lane.b32.xlu0 %v430, 12
        %v876 = vpop.permute.xlu0 %875
        %877 = vrot.lane.b32.xlu0 %v363, 12
        %v878 = vpop.permute.xlu0 %877
        %879 = vrot.lane.b32.xlu0 %v431, 12
        %v880 = vpop.permute.xlu0 %879
        %881 = vrot.lane.b32.xlu0 %v366, 12
        %v882 = vpop.permute.xlu0 %881
        %883 = vrot.lane.b32.xlu0 %v432, 12
        %v884 = vpop.permute.xlu0 %883
        %885 = vrot.lane.b32.xlu0 %v369, 12
        %v886 = vpop.permute.xlu0 %885
        %v920 = vrot.slane %v432, 1
        %v921 = vrot.slane %v369, 1
        %v922 = vsel %vm480, %v920, %v921
        %v923 = vrot.slane %v448, 1
        %v924 = vsel %vm480, %v921, %v923
        %925 = vrot.lane.b32.xlu0 %v485, 16
        %v926 = vpop.permute.xlu0 %925
        %927 = vrot.lane.b32.xlu0 %v487, 16
        %v928 = vpop.permute.xlu0 %927
        %929 = vrot.lane.b32.xlu0 %v490, 16
        %v930 = vpop.permute.xlu0 %929
        %931 = vrot.lane.b32.xlu0 %v492, 16
        %v932 = vpop.permute.xlu0 %931
        %933 = vrot.lane.b32.xlu0 %v495, 16
        %v934 = vpop.permute.xlu0 %933
        %935 = vrot.lane.b32.xlu0 %v497, 16
        %v936 = vpop.permute.xlu0 %935
        %937 = vrot.lane.b32.xlu0 %v500, 16
        %v938 = vpop.permute.xlu0 %937
        %939 = vrot.lane.b32.xlu0 %v502, 16
        %v940 = vpop.permute.xlu0 %939
        %941 = vrot.lane.b32.xlu0 %v505, 16
        %v942 = vpop.permute.xlu0 %941
        %943 = vrot.lane.b32.xlu0 %v507, 16
        %v944 = vpop.permute.xlu0 %943
        %945 = vrot.lane.b32.xlu0 %v510, 16
        %v946 = vpop.permute.xlu0 %945
        %947 = vrot.lane.b32.xlu0 %v512, 16
        %v948 = vpop.permute.xlu0 %947
        %949 = vrot.lane.b32.xlu0 %v515, 16
        %v950 = vpop.permute.xlu0 %949
        %951 = vrot.lane.b32.xlu0 %v517, 16
        %v952 = vpop.permute.xlu0 %951
        %953 = vrot.lane.b32.xlu0 %v520, 16
        %v954 = vpop.permute.xlu0 %953
        %955 = vrot.lane.b32.xlu0 %v522, 16
        %v956 = vpop.permute.xlu0 %955
        %957 = vrot.lane.b32.xlu0 %v525, 16
        %v958 = vpop.permute.xlu0 %957
        %959 = vrot.lane.b32.xlu0 %v527, 16
        %v960 = vpop.permute.xlu0 %959
        %961 = vrot.lane.b32.xlu0 %v530, 16
        %v962 = vpop.permute.xlu0 %961
        %963 = vrot.lane.b32.xlu0 %v532, 16
        %v964 = vpop.permute.xlu0 %963
        %965 = vrot.lane.b32.xlu0 %v535, 16
        %v966 = vpop.permute.xlu0 %965
        %967 = vrot.lane.b32.xlu0 %v537, 16
        %v968 = vpop.permute.xlu0 %967
        %969 = vrot.lane.b32.xlu0 %v540, 16
        %v970 = vpop.permute.xlu0 %969
        %971 = vrot.lane.b32.xlu0 %v542, 16
        %v972 = vpop.permute.xlu0 %971
        %973 = vrot.lane.b32.xlu0 %v545, 16
        %v974 = vpop.permute.xlu0 %973
        %975 = vrot.lane.b32.xlu0 %v547, 16
        %v976 = vpop.permute.xlu0 %975
        %977 = vrot.lane.b32.xlu0 %v550, 16
        %v978 = vpop.permute.xlu0 %977
        %979 = vrot.lane.b32.xlu0 %v552, 16
        %v980 = vpop.permute.xlu0 %979
        %981 = vrot.lane.b32.xlu0 %v555, 16
        %v982 = vpop.permute.xlu0 %981
        %983 = vrot.lane.b32.xlu0 %v557, 16
        %v984 = vpop.permute.xlu0 %983
        %985 = vrot.lane.b32.xlu0 %v922, 16
        %v986 = vpop.permute.xlu0 %985
        %987 = vrot.lane.b32.xlu0 %v924, 16
        %v988 = vpop.permute.xlu0 %987
        %v1021 = vrot.slane %v432, 2
        %v1022 = vrot.slane %v369, 2
        %v1023 = vsel %vm651, %v1021, %v1022
        %v1024 = vrot.slane %v448, 2
        %v1025 = vsel %vm651, %v1022, %v1024
        %1026 = vrot.lane.b32.xlu0 %v656, 20
        %v1027 = vpop.permute.xlu0 %1026
        %1028 = vrot.lane.b32.xlu0 %v658, 20
        %v1029 = vpop.permute.xlu0 %1028
        %1030 = vrot.lane.b32.xlu0 %v661, 20
        %v1031 = vpop.permute.xlu0 %1030
        %1032 = vrot.lane.b32.xlu0 %v663, 20
        %v1033 = vpop.permute.xlu0 %1032
        %1034 = vrot.lane.b32.xlu0 %v666, 20
        %v1035 = vpop.permute.xlu0 %1034
        %1036 = vrot.lane.b32.xlu0 %v668, 20
        %v1037 = vpop.permute.xlu0 %1036
        %1038 = vrot.lane.b32.xlu0 %v671, 20
        %v1039 = vpop.permute.xlu0 %1038
        %1040 = vrot.lane.b32.xlu0 %v673, 20
        %v1041 = vpop.permute.xlu0 %1040
        %1042 = vrot.lane.b32.xlu0 %v676, 20
        %v1043 = vpop.permute.xlu0 %1042
        %1044 = vrot.lane.b32.xlu0 %v678, 20
        %v1045 = vpop.permute.xlu0 %1044
        %1046 = vrot.lane.b32.xlu0 %v681, 20
        %v1047 = vpop.permute.xlu0 %1046
        %1048 = vrot.lane.b32.xlu0 %v683, 20
        %v1049 = vpop.permute.xlu0 %1048
        %1050 = vrot.lane.b32.xlu0 %v686, 20
        %v1051 = vpop.permute.xlu0 %1050
        %1052 = vrot.lane.b32.xlu0 %v688, 20
        %v1053 = vpop.permute.xlu0 %1052
        %1054 = vrot.lane.b32.xlu0 %v691, 20
        %v1055 = vpop.permute.xlu0 %1054
        %1056 = vrot.lane.b32.xlu0 %v693, 20
        %v1057 = vpop.permute.xlu0 %1056
        %1058 = vrot.lane.b32.xlu0 %v696, 20
        %v1059 = vpop.permute.xlu0 %1058
        %1060 = vrot.lane.b32.xlu0 %v698, 20
        %v1061 = vpop.permute.xlu0 %1060
        %1062 = vrot.lane.b32.xlu0 %v701, 20
        %v1063 = vpop.permute.xlu0 %1062
        %1064 = vrot.lane.b32.xlu0 %v703, 20
        %v1065 = vpop.permute.xlu0 %1064
        %1066 = vrot.lane.b32.xlu0 %v706, 20
        %v1067 = vpop.permute.xlu0 %1066
        %1068 = vrot.lane.b32.xlu0 %v708, 20
        %v1069 = vpop.permute.xlu0 %1068
        %1070 = vrot.lane.b32.xlu0 %v711, 20
        %v1071 = vpop.permute.xlu0 %1070
        %1072 = vrot.lane.b32.xlu0 %v713, 20
        %v1073 = vpop.permute.xlu0 %1072
        %1074 = vrot.lane.b32.xlu0 %v716, 20
        %v1075 = vpop.permute.xlu0 %1074
        %1076 = vrot.lane.b32.xlu0 %v718, 20
        %v1077 = vpop.permute.xlu0 %1076
        %1078 = vrot.lane.b32.xlu0 %v721, 20
        %v1079 = vpop.permute.xlu0 %1078
        %1080 = vrot.lane.b32.xlu0 %v723, 20
        %v1081 = vpop.permute.xlu0 %1080
        %1082 = vrot.lane.b32.xlu0 %v726, 20
        %v1083 = vpop.permute.xlu0 %1082
        %1084 = vrot.lane.b32.xlu0 %v728, 20
        %v1085 = vpop.permute.xlu0 %1084
        %1086 = vrot.lane.b32.xlu0 %v1023, 20
        %v1087 = vpop.permute.xlu0 %1086
        %1088 = vrot.lane.b32.xlu0 %v1025, 20
        %v1089 = vpop.permute.xlu0 %1088
        %1122 = vrot.lane.b32.xlu0 %v418, 24
        %v1123 = vpop.permute.xlu0 %1122
        %1124 = vrot.lane.b32.xlu0 %v327, 24
        %v1125 = vpop.permute.xlu0 %1124
        %1126 = vrot.lane.b32.xlu0 %v419, 24
        %v1127 = vpop.permute.xlu0 %1126
        %1128 = vrot.lane.b32.xlu0 %v330, 24
        %v1129 = vpop.permute.xlu0 %1128
        %1130 = vrot.lane.b32.xlu0 %v420, 24
        %v1131 = vpop.permute.xlu0 %1130
        %1132 = vrot.lane.b32.xlu0 %v333, 24
        %v1133 = vpop.permute.xlu0 %1132
        %1134 = vrot.lane.b32.xlu0 %v421, 24
        %v1135 = vpop.permute.xlu0 %1134
        %1136 = vrot.lane.b32.xlu0 %v336, 24
        %v1137 = vpop.permute.xlu0 %1136
        %1138 = vrot.lane.b32.xlu0 %v422, 24
        %v1139 = vpop.permute.xlu0 %1138
        %1140 = vrot.lane.b32.xlu0 %v339, 24
        %v1141 = vpop.permute.xlu0 %1140
        %1142 = vrot.lane.b32.xlu0 %v423, 24
        %v1143 = vpop.permute.xlu0 %1142
        %1144 = vrot.lane.b32.xlu0 %v342, 24
        %v1145 = vpop.permute.xlu0 %1144
        %1146 = vrot.lane.b32.xlu0 %v424, 24
        %v1147 = vpop.permute.xlu0 %1146
        %1148 = vrot.lane.b32.xlu0 %v345, 24
        %v1149 = vpop.permute.xlu0 %1148
        %1150 = vrot.lane.b32.xlu0 %v425, 24
        %v1151 = vpop.permute.xlu0 %1150
        %1152 = vrot.lane.b32.xlu0 %v348, 24
        %v1153 = vpop.permute.xlu0 %1152
        %1154 = vrot.lane.b32.xlu0 %v426, 24
        %v1155 = vpop.permute.xlu0 %1154
        %1156 = vrot.lane.b32.xlu0 %v351, 24
        %v1157 = vpop.permute.xlu0 %1156
        %1158 = vrot.lane.b32.xlu0 %v427, 24
        %v1159 = vpop.permute.xlu0 %1158
        %1160 = vrot.lane.b32.xlu0 %v354, 24
        %v1161 = vpop.permute.xlu0 %1160
        %1162 = vrot.lane.b32.xlu0 %v428, 24
        %v1163 = vpop.permute.xlu0 %1162
        %1164 = vrot.lane.b32.xlu0 %v357, 24
        %v1165 = vpop.permute.xlu0 %1164
        %1166 = vrot.lane.b32.xlu0 %v429, 24
        %v1167 = vpop.permute.xlu0 %1166
        %1168 = vrot.lane.b32.xlu0 %v360, 24
        %v1169 = vpop.permute.xlu0 %1168
        %1170 = vrot.lane.b32.xlu0 %v430, 24
        %v1171 = vpop.permute.xlu0 %1170
        %1172 = vrot.lane.b32.xlu0 %v363, 24
        %v1173 = vpop.permute.xlu0 %1172
        %1174 = vrot.lane.b32.xlu0 %v431, 24
        %v1175 = vpop.permute.xlu0 %1174
        %1176 = vrot.lane.b32.xlu0 %v366, 24
        %v1177 = vpop.permute.xlu0 %1176
        %1178 = vrot.lane.b32.xlu0 %v432, 24
        %v1179 = vpop.permute.xlu0 %1178
        %1180 = vrot.lane.b32.xlu0 %v369, 24
        %v1181 = vpop.permute.xlu0 %1180
        %1182 = vrot.lane.b32.xlu0 0.0, 24
        %v1183 = vpop.permute.xlu0 %1182
        %1215 = vrot.lane.b32.xlu0 %v490, 28
        %v1216 = vpop.permute.xlu0 %1215
        %1217 = vrot.lane.b32.xlu0 %v492, 28
        %v1218 = vpop.permute.xlu0 %1217
        %1219 = vrot.lane.b32.xlu0 %v495, 28
        %v1220 = vpop.permute.xlu0 %1219
        %1221 = vrot.lane.b32.xlu0 %v497, 28
        %v1222 = vpop.permute.xlu0 %1221
        %1223 = vrot.lane.b32.xlu0 %v500, 28
        %v1224 = vpop.permute.xlu0 %1223
        %1225 = vrot.lane.b32.xlu0 %v502, 28
        %v1226 = vpop.permute.xlu0 %1225
        %1227 = vrot.lane.b32.xlu0 %v505, 28
        %v1228 = vpop.permute.xlu0 %1227
        %1229 = vrot.lane.b32.xlu0 %v507, 28
        %v1230 = vpop.permute.xlu0 %1229
        %1231 = vrot.lane.b32.xlu0 %v510, 28
        %v1232 = vpop.permute.xlu0 %1231
        %1233 = vrot.lane.b32.xlu0 %v512, 28
        %v1234 = vpop.permute.xlu0 %1233
        %1235 = vrot.lane.b32.xlu0 %v515, 28
        %v1236 = vpop.permute.xlu0 %1235
        %1237 = vrot.lane.b32.xlu0 %v517, 28
        %v1238 = vpop.permute.xlu0 %1237
        %1239 = vrot.lane.b32.xlu0 %v520, 28
        %v1240 = vpop.permute.xlu0 %1239
        %1241 = vrot.lane.b32.xlu0 %v522, 28
        %v1242 = vpop.permute.xlu0 %1241
        %1243 = vrot.lane.b32.xlu0 %v525, 28
        %v1244 = vpop.permute.xlu0 %1243
        %1245 = vrot.lane.b32.xlu0 %v527, 28
        %v1246 = vpop.permute.xlu0 %1245
        %1247 = vrot.lane.b32.xlu0 %v530, 28
        %v1248 = vpop.permute.xlu0 %1247
        %1249 = vrot.lane.b32.xlu0 %v532, 28
        %v1250 = vpop.permute.xlu0 %1249
        %1251 = vrot.lane.b32.xlu0 %v535, 28
        %v1252 = vpop.permute.xlu0 %1251
        %1253 = vrot.lane.b32.xlu0 %v537, 28
        %v1254 = vpop.permute.xlu0 %1253
        %1255 = vrot.lane.b32.xlu0 %v540, 28
        %v1256 = vpop.permute.xlu0 %1255
        %1257 = vrot.lane.b32.xlu0 %v542, 28
        %v1258 = vpop.permute.xlu0 %1257
        %1259 = vrot.lane.b32.xlu0 %v545, 28
        %v1260 = vpop.permute.xlu0 %1259
        %1261 = vrot.lane.b32.xlu0 %v547, 28
        %v1262 = vpop.permute.xlu0 %1261
        %1263 = vrot.lane.b32.xlu0 %v550, 28
        %v1264 = vpop.permute.xlu0 %1263
        %1265 = vrot.lane.b32.xlu0 %v552, 28
        %v1266 = vpop.permute.xlu0 %1265
        %1267 = vrot.lane.b32.xlu0 %v555, 28
        %v1268 = vpop.permute.xlu0 %1267
        %1269 = vrot.lane.b32.xlu0 %v557, 28
        %v1270 = vpop.permute.xlu0 %1269
        %1271 = vrot.lane.b32.xlu0 %v922, 28
        %v1272 = vpop.permute.xlu0 %1271
        %1273 = vrot.lane.b32.xlu0 %v924, 28
        %v1274 = vpop.permute.xlu0 %1273
        %1275 = vrot.lane.b32.xlu0 %v482, 28
        %v1276 = vpop.permute.xlu0 %1275
        %1308 = vrot.lane.b32.xlu0 %v661, 32
        %v1309 = vpop.permute.xlu0 %1308
        %1310 = vrot.lane.b32.xlu0 %v663, 32
        %v1311 = vpop.permute.xlu0 %1310
        %1312 = vrot.lane.b32.xlu0 %v666, 32
        %v1313 = vpop.permute.xlu0 %1312
        %1314 = vrot.lane.b32.xlu0 %v668, 32
        %v1315 = vpop.permute.xlu0 %1314
        %1316 = vrot.lane.b32.xlu0 %v671, 32
        %v1317 = vpop.permute.xlu0 %1316
        %1318 = vrot.lane.b32.xlu0 %v673, 32
        %v1319 = vpop.permute.xlu0 %1318
        %1320 = vrot.lane.b32.xlu0 %v676, 32
        %v1321 = vpop.permute.xlu0 %1320
        %1322 = vrot.lane.b32.xlu0 %v678, 32
        %v1323 = vpop.permute.xlu0 %1322
        %1324 = vrot.lane.b32.xlu0 %v681, 32
        %v1325 = vpop.permute.xlu0 %1324
        %1326 = vrot.lane.b32.xlu0 %v683, 32
        %v1327 = vpop.permute.xlu0 %1326
        %1328 = vrot.lane.b32.xlu0 %v686, 32
        %v1329 = vpop.permute.xlu0 %1328
        %1330 = vrot.lane.b32.xlu0 %v688, 32
        %v1331 = vpop.permute.xlu0 %1330
        %1332 = vrot.lane.b32.xlu0 %v691, 32
        %v1333 = vpop.permute.xlu0 %1332
        %1334 = vrot.lane.b32.xlu0 %v693, 32
        %v1335 = vpop.permute.xlu0 %1334
        %1336 = vrot.lane.b32.xlu0 %v696, 32
        %v1337 = vpop.permute.xlu0 %1336
        %1338 = vrot.lane.b32.xlu0 %v698, 32
        %v1339 = vpop.permute.xlu0 %1338
        %1340 = vrot.lane.b32.xlu0 %v701, 32
        %v1341 = vpop.permute.xlu0 %1340
        %1342 = vrot.lane.b32.xlu0 %v703, 32
        %v1343 = vpop.permute.xlu0 %1342
        %1344 = vrot.lane.b32.xlu0 %v706, 32
        %v1345 = vpop.permute.xlu0 %1344
        %1346 = vrot.lane.b32.xlu0 %v708, 32
        %v1347 = vpop.permute.xlu0 %1346
        %1348 = vrot.lane.b32.xlu0 %v711, 32
        %v1349 = vpop.permute.xlu0 %1348
        %1350 = vrot.lane.b32.xlu0 %v713, 32
        %v1351 = vpop.permute.xlu0 %1350
        %1352 = vrot.lane.b32.xlu0 %v716, 32
        %v1353 = vpop.permute.xlu0 %1352
        %1354 = vrot.lane.b32.xlu0 %v718, 32
        %v1355 = vpop.permute.xlu0 %1354
        %1356 = vrot.lane.b32.xlu0 %v721, 32
        %v1357 = vpop.permute.xlu0 %1356
        %1358 = vrot.lane.b32.xlu0 %v723, 32
        %v1359 = vpop.permute.xlu0 %1358
        %1360 = vrot.lane.b32.xlu0 %v726, 32
        %v1361 = vpop.permute.xlu0 %1360
        %1362 = vrot.lane.b32.xlu0 %v728, 32
        %v1363 = vpop.permute.xlu0 %1362
        %1364 = vrot.lane.b32.xlu0 %v1023, 32
        %v1365 = vpop.permute.xlu0 %1364
        %1366 = vrot.lane.b32.xlu0 %v1025, 32
        %v1367 = vpop.permute.xlu0 %1366
        %1368 = vrot.lane.b32.xlu0 %v653, 32
        %v1369 = vpop.permute.xlu0 %1368
        %vm1401 = vcmask 31744
        %v1402 = vsel %vm1401, 0.0, %v559
        %v1403 = vsel %vm1401, %v417, %v561
        %v1404 = vsel %vm1401, %v324, %v563
        %v1405 = vsel %vm1401, %v418, %v565
        %v1406 = vsel %vm1401, %v327, %v567
        %v1407 = vsel %vm1401, %v419, %v569
        %v1408 = vsel %vm1401, %v330, %v571
        %v1409 = vsel %vm1401, %v420, %v573
        %v1410 = vsel %vm1401, %v333, %v575
        %v1411 = vsel %vm1401, %v421, %v577
        %v1412 = vsel %vm1401, %v336, %v579
        %v1413 = vsel %vm1401, %v422, %v581
        %v1414 = vsel %vm1401, %v339, %v583
        %v1415 = vsel %vm1401, %v423, %v585
        %v1416 = vsel %vm1401, %v342, %v587
        %v1417 = vsel %vm1401, %v424, %v589
        %v1418 = vsel %vm1401, %v345, %v591
        %v1419 = vsel %vm1401, %v425, %v593
        %v1420 = vsel %vm1401, %v348, %v595
        %v1421 = vsel %vm1401, %v426, %v597
        %v1422 = vsel %vm1401, %v351, %v599
        %v1423 = vsel %vm1401, %v427, %v601
        %v1424 = vsel %vm1401, %v354, %v603
        %v1425 = vsel %vm1401, %v428, %v605
        %v1426 = vsel %vm1401, %v357, %v607
        %v1427 = vsel %vm1401, %v429, %v609
        %v1428 = vsel %vm1401, %v360, %v611
        %v1429 = vsel %vm1401, %v430, %v613
        %v1430 = vsel %vm1401, %v363, %v615
        %v1431 = vsel %vm1401, %v431, %v617
        %v1432 = vsel %vm1401, %v366, %v619
        %vm1433 = vcmask 64512
        %v1434 = vsel %vm1433, %v1402, %v730
        %v1435 = vsel %vm1433, %v1403, %v732
        %v1436 = vsel %vm1433, %v1404, %v734
        %v1437 = vsel %vm1433, %v1405, %v736
        %v1438 = vsel %vm1433, %v1406, %v738
        %v1439 = vsel %vm1433, %v1407, %v740
        %v1440 = vsel %vm1433, %v1408, %v742
        %v1441 = vsel %vm1433, %v1409, %v744
        %v1442 = vsel %vm1433, %v1410, %v746
        %v1443 = vsel %vm1433, %v1411, %v748
        %v1444 = vsel %vm1433, %v1412, %v750
        %v1445 = vsel %vm1433, %v1413, %v752
        %v1446 = vsel %vm1433, %v1414, %v754
        %v1447 = vsel %vm1433, %v1415, %v756
        %v1448 = vsel %vm1433, %v1416, %v758
        %v1449 = vsel %vm1433, %v1417, %v760
        %v1450 = vsel %vm1433, %v1418, %v762
        %v1451 = vsel %vm1433, %v1419, %v764
        %v1452 = vsel %vm1433, %v1420, %v766
        %v1453 = vsel %vm1433, %v1421, %v768
        %v1454 = vsel %vm1433, %v1422, %v770
        %v1455 = vsel %vm1433, %v1423, %v772
        %v1456 = vsel %vm1433, %v1424, %v774
        %v1457 = vsel %vm1433, %v1425, %v776
        %v1458 = vsel %vm1433, %v1426, %v778
        %v1459 = vsel %vm1433, %v1427, %v780
        %v1460 = vsel %vm1433, %v1428, %v782
        %v1461 = vsel %vm1433, %v1429, %v784
        %v1462 = vsel %vm1433, %v1430, %v786
        %v1463 = vsel %vm1433, %v1431, %v788
        %v1464 = vsel %vm1433, %v1432, %v790
        %vm1465 = vcmask 97280
        %v1466 = vsel %vm1465, %v1434, %v824
        %v1467 = vsel %vm1465, %v1434, %v826
        %v1468 = vsel %vm1465, %v1435, %v828
        %v1469 = vsel %vm1465, %v1436, %v830
        %v1470 = vsel %vm1465, %v1437, %v832
        %v1471 = vsel %vm1465, %v1438, %v834
        %v1472 = vsel %vm1465, %v1439, %v836
        %v1473 = vsel %vm1465, %v1440, %v838
        %v1474 = vsel %vm1465, %v1441, %v840
        %v1475 = vsel %vm1465, %v1442, %v842
        %v1476 = vsel %vm1465, %v1443, %v844
        %v1477 = vsel %vm1465, %v1444, %v846
        %v1478 = vsel %vm1465, %v1445, %v848
        %v1479 = vsel %vm1465, %v1446, %v850
        %v1480 = vsel %vm1465, %v1447, %v852
        %v1481 = vsel %vm1465, %v1448, %v854
        %v1482 = vsel %vm1465, %v1449, %v856
        %v1483 = vsel %vm1465, %v1450, %v858
        %v1484 = vsel %vm1465, %v1451, %v860
        %v1485 = vsel %vm1465, %v1452, %v862
        %v1486 = vsel %vm1465, %v1453, %v864
        %v1487 = vsel %vm1465, %v1454, %v866
        %v1488 = vsel %vm1465, %v1455, %v868
        %v1489 = vsel %vm1465, %v1456, %v870
        %v1490 = vsel %vm1465, %v1457, %v872
        %v1491 = vsel %vm1465, %v1458, %v874
        %v1492 = vsel %vm1465, %v1459, %v876
        %v1493 = vsel %vm1465, %v1460, %v878
        %v1494 = vsel %vm1465, %v1461, %v880
        %v1495 = vsel %vm1465, %v1462, %v882
        %v1496 = vsel %vm1465, %v1463, %v884
        %v1497 = vsel %vm1465, %v1464, %v886
        %vm1498 = vcmask 130048
        %v1499 = vsel %vm1498, %v1466, %v926
        %v1500 = vsel %vm1498, %v1467, %v928
        %v1501 = vsel %vm1498, %v1468, %v930
        %v1502 = vsel %vm1498, %v1469, %v932
        %v1503 = vsel %vm1498, %v1470, %v934
        %v1504 = vsel %vm1498, %v1471, %v936
        %v1505 = vsel %vm1498, %v1472, %v938
        %v1506 = vsel %vm1498, %v1473, %v940
        %v1507 = vsel %vm1498, %v1474, %v942
        %v1508 = vsel %vm1498, %v1475, %v944
        %v1509 = vsel %vm1498, %v1476, %v946
        %v1510 = vsel %vm1498, %v1477, %v948
        %v1511 = vsel %vm1498, %v1478, %v950
        %v1512 = vsel %vm1498, %v1479, %v952
        %v1513 = vsel %vm1498, %v1480, %v954
        %v1514 = vsel %vm1498, %v1481, %v956
        %v1515 = vsel %vm1498, %v1482, %v958
        %v1516 = vsel %vm1498, %v1483, %v960
        %v1517 = vsel %vm1498, %v1484, %v962
        %v1518 = vsel %vm1498, %v1485, %v964
        %v1519 = vsel %vm1498, %v1486, %v966
        %v1520 = vsel %vm1498, %v1487, %v968
        %v1521 = vsel %vm1498, %v1488, %v970
        %v1522 = vsel %vm1498, %v1489, %v972
        %v1523 = vsel %vm1498, %v1490, %v974
        %v1524 = vsel %vm1498, %v1491, %v976
        %v1525 = vsel %vm1498, %v1492, %v978
        %v1526 = vsel %vm1498, %v1493, %v980
        %v1527 = vsel %vm1498, %v1494, %v982
        %v1528 = vsel %vm1498, %v1495, %v984
        %v1529 = vsel %vm1498, %v1496, %v986
        %v1530 = vsel %vm1498, %v1497, %v988
        %vm1531 = vcmask 162816
        %v1532 = vsel %vm1531, %v1499, %v1027
        %v1533 = vsel %vm1531, %v1500, %v1029
        %v1534 = vsel %vm1531, %v1501, %v1031
        %v1535 = vsel %vm1531, %v1502, %v1033
        %v1536 = vsel %vm1531, %v1503, %v1035
        %v1537 = vsel %vm1531, %v1504, %v1037
        %v1538 = vsel %vm1531, %v1505, %v1039
        %v1539 = vsel %vm1531, %v1506, %v1041
        %v1540 = vsel %vm1531, %v1507, %v1043
        %v1541 = vsel %vm1531, %v1508, %v1045
        %v1542 = vsel %vm1531, %v1509, %v1047
        %v1543 = vsel %vm1531, %v1510, %v1049
        %v1544 = vsel %vm1531, %v1511, %v1051
        %v1545 = vsel %vm1531, %v1512, %v1053
        %v1546 = vsel %vm1531, %v1513, %v1055
        %v1547 = vsel %vm1531, %v1514, %v1057
        %v1548 = vsel %vm1531, %v1515, %v1059
        %v1549 = vsel %vm1531, %v1516, %v1061
        %v1550 = vsel %vm1531, %v1517, %v1063
        %v1551 = vsel %vm1531, %v1518, %v1065
        %v1552 = vsel %vm1531, %v1519, %v1067
        %v1553 = vsel %vm1531, %v1520, %v1069
        %v1554 = vsel %vm1531, %v1521, %v1071
        %v1555 = vsel %vm1531, %v1522, %v1073
        %v1556 = vsel %vm1531, %v1523, %v1075
        %v1557 = vsel %vm1531, %v1524, %v1077
        %v1558 = vsel %vm1531, %v1525, %v1079
        %v1559 = vsel %vm1531, %v1526, %v1081
        %v1560 = vsel %vm1531, %v1527, %v1083
        %v1561 = vsel %vm1531, %v1528, %v1085
        %v1562 = vsel %vm1531, %v1529, %v1087
        %v1563 = vsel %vm1531, %v1530, %v1089
        %vm1564 = vcmask 195584
        %v1565 = vsel %vm1564, %v1532, %v1123
        %v1566 = vsel %vm1564, %v1533, %v1125
        %v1567 = vsel %vm1564, %v1534, %v1127
        %v1568 = vsel %vm1564, %v1535, %v1129
        %v1569 = vsel %vm1564, %v1536, %v1131
        %v1570 = vsel %vm1564, %v1537, %v1133
        %v1571 = vsel %vm1564, %v1538, %v1135
        %v1572 = vsel %vm1564, %v1539, %v1137
        %v1573 = vsel %vm1564, %v1540, %v1139
        %v1574 = vsel %vm1564, %v1541, %v1141
        %v1575 = vsel %vm1564, %v1542, %v1143
        %v1576 = vsel %vm1564, %v1543, %v1145
        %v1577 = vsel %vm1564, %v1544, %v1147
        %v1578 = vsel %vm1564, %v1545, %v1149
        %v1579 = vsel %vm1564, %v1546, %v1151
        %v1580 = vsel %vm1564, %v1547, %v1153
        %v1581 = vsel %vm1564, %v1548, %v1155
        %v1582 = vsel %vm1564, %v1549, %v1157
        %v1583 = vsel %vm1564, %v1550, %v1159
        %v1584 = vsel %vm1564, %v1551, %v1161
        %v1585 = vsel %vm1564, %v1552, %v1163
        %v1586 = vsel %vm1564, %v1553, %v1165
        %v1587 = vsel %vm1564, %v1554, %v1167
        %v1588 = vsel %vm1564, %v1555, %v1169
        %v1589 = vsel %vm1564, %v1556, %v1171
        %v1590 = vsel %vm1564, %v1557, %v1173
        %v1591 = vsel %vm1564, %v1558, %v1175
        %v1592 = vsel %vm1564, %v1559, %v1177
        %v1593 = vsel %vm1564, %v1560, %v1179
        %v1594 = vsel %vm1564, %v1561, %v1181
        %v1595 = vsel %vm1564, %v1562, %v1183
        %v1596 = vsel %vm1564, %v1563, %v1183
        %vm1597 = vcmask 228352
        %v1598 = vsel %vm1597, %v1565, %v1216
        %v1599 = vsel %vm1597, %v1566, %v1218
        %v1600 = vsel %vm1597, %v1567, %v1220
        %v1601 = vsel %vm1597, %v1568, %v1222
        %v1602 = vsel %vm1597, %v1569, %v1224
        %v1603 = vsel %vm1597, %v1570, %v1226
        %v1604 = vsel %vm1597, %v1571, %v1228
        %v1605 = vsel %vm1597, %v1572, %v1230
        %v1606 = vsel %vm1597, %v1573, %v1232
        %v1607 = vsel %vm1597, %v1574, %v1234
        %v1608 = vsel %vm1597, %v1575, %v1236
        %v1609 = vsel %vm1597, %v1576, %v1238
        %v1610 = vsel %vm1597, %v1577, %v1240
        %v1611 = vsel %vm1597, %v1578, %v1242
        %v1612 = vsel %vm1597, %v1579, %v1244
        %v1613 = vsel %vm1597, %v1580, %v1246
        %v1614 = vsel %vm1597, %v1581, %v1248
        %v1615 = vsel %vm1597, %v1582, %v1250
        %v1616 = vsel %vm1597, %v1583, %v1252
        %v1617 = vsel %vm1597, %v1584, %v1254
        %v1618 = vsel %vm1597, %v1585, %v1256
        %v1619 = vsel %vm1597, %v1586, %v1258
        %v1620 = vsel %vm1597, %v1587, %v1260
        %v1621 = vsel %vm1597, %v1588, %v1262
        %v1622 = vsel %vm1597, %v1589, %v1264
        %v1623 = vsel %vm1597, %v1590, %v1266
        %v1624 = vsel %vm1597, %v1591, %v1268
        %v1625 = vsel %vm1597, %v1592, %v1270
        %v1626 = vsel %vm1597, %v1593, %v1272
        %v1627 = vsel %vm1597, %v1594, %v1274
        %v1628 = vsel %vm1597, %v1595, %v1276
        %v1629 = vsel %vm1597, %v1596, %v1276
        %vm1630 = vcmask 261120
        %v1631 = vsel %vm1630, %v1598, %v1309
        %v1632 = vsel %vm1630, %v1599, %v1311
        %v1633 = vsel %vm1630, %v1600, %v1313
        %v1634 = vsel %vm1630, %v1601, %v1315
        %v1635 = vsel %vm1630, %v1602, %v1317
        %v1636 = vsel %vm1630, %v1603, %v1319
        %v1637 = vsel %vm1630, %v1604, %v1321
        %v1638 = vsel %vm1630, %v1605, %v1323
        %v1639 = vsel %vm1630, %v1606, %v1325
        %v1640 = vsel %vm1630, %v1607, %v1327
        %v1641 = vsel %vm1630, %v1608, %v1329
        %v1642 = vsel %vm1630, %v1609, %v1331
        %v1643 = vsel %vm1630, %v1610, %v1333
        %v1644 = vsel %vm1630, %v1611, %v1335
        %v1645 = vsel %vm1630, %v1612, %v1337
        %v1646 = vsel %vm1630, %v1613, %v1339
        %v1647 = vsel %vm1630, %v1614, %v1341
        %v1648 = vsel %vm1630, %v1615, %v1343
        %v1649 = vsel %vm1630, %v1616, %v1345
        %v1650 = vsel %vm1630, %v1617, %v1347
        %v1651 = vsel %vm1630, %v1618, %v1349
        %v1652 = vsel %vm1630, %v1619, %v1351
        %v1653 = vsel %vm1630, %v1620, %v1353
        %v1654 = vsel %vm1630, %v1621, %v1355
        %v1655 = vsel %vm1630, %v1622, %v1357
        %v1656 = vsel %vm1630, %v1623, %v1359
        %v1657 = vsel %vm1630, %v1624, %v1361
        %v1658 = vsel %vm1630, %v1625, %v1363
        %v1659 = vsel %vm1630, %v1626, %v1365
        %v1660 = vsel %vm1630, %v1627, %v1367
        %v1661 = vsel %vm1630, %v1628, %v1369
        %v1662 = vsel %vm1630, %v1629, %v1369
        %v1663 = vpack.c.bf16 %v1632, %v1631
        %v1664 = vpack.c.bf16 %v1634, %v1633
        %v1665 = vpack.c.bf16 %v1636, %v1635
        %v1666 = vpack.c.bf16 %v1638, %v1637
        %v1667 = vpack.c.bf16 %v1640, %v1639
        %v1668 = vpack.c.bf16 %v1642, %v1641
        %v1669 = vpack.c.bf16 %v1644, %v1643
        %v1670 = vpack.c.bf16 %v1646, %v1645
        %v1671 = vpack.c.bf16 %v1648, %v1647
        %v1672 = vpack.c.bf16 %v1650, %v1649
        %v1673 = vpack.c.bf16 %v1652, %v1651
        %v1674 = vpack.c.bf16 %v1654, %v1653
        %v1675 = vpack.c.bf16 %v1656, %v1655
        %v1676 = vpack.c.bf16 %v1658, %v1657
        %v1677 = vpack.c.bf16 %v1660, %v1659
        %v1678 = vpack.c.bf16 %v1662, %v1661
        %v1679 = vld [vmem:[%s1] sm:$0xff]
        %v1680 = vld [vmem:[%s1 + $0x8] sm:$0xff]
        %v1681 = vld [vmem:[%s1 + $0x10] sm:$0xff]
        %v1682 = vld [vmem:[%s1 + $0x18] sm:$0xff]
        %v1683 = vld [vmem:[%s1 + $0x20] sm:$0x33]
        %v1684 = vld [vmem:[%s2] sm:$0x3]
        %v1686 = vlaneseq
        %v1687 = vshrl.u32 %v1686, 7
        %v1688 = vsub.s32 0, %v1687
        %v1689 = vrot.slane %v1684, %v1688
        %v1690 = vlaneseq
        %v1691 = vshrl.u32 %v1690, 7
        %v1692 = vsub.s32 1, %v1691
        %v1693 = vrot.slane %v1684, %v1692
        %v1701 = vunpack.c.l.b16 %v1679
        %v1702 = vunpack.c.h.b16 %v1679
        %v1703 = vunpack.c.l.b16 %v1680
        %v1704 = vunpack.c.h.b16 %v1680
        %v1705 = vunpack.c.l.b16 %v1681
        %v1706 = vunpack.c.h.b16 %v1681
        %v1707 = vunpack.c.l.b16 %v1682
        %v1708 = vunpack.c.h.b16 %v1682
        %v1709 = vunpack.c.l.b16 %v1683
        %v1710 = vunpack.c.h.b16 %v1683
        %v1711 = vpack.c.b16 %v1703, %v1701
        %v1712 = vpack.c.b16 %v1704, %v1702
        %v1713 = vpack.c.b16 %v1707, %v1705
        %v1714 = vpack.c.b16 %v1708, %v1706
        %v1715 = vpack.c.b16 %v1709, %v1709
        %v1716 = vpack.c.b16 %v1710, %v1710
        %vm1721 = vcmask 293888
        %v1723 = vsel %vm1721, %v1663, 0
        %v1726 = vsel %vm1721, %v1664, 0
        %v1729 = vsel %vm1721, %v1665, 0
        %v1732 = vsel %vm1721, %v1666, 0
        %v1735 = vsel %vm1721, %v1667, 0
        %v1738 = vsel %vm1721, %v1668, 0
        %v1741 = vsel %vm1721, %v1669, 0
        %v1744 = vsel %vm1721, %v1670, 0
        %v1747 = vsel %vm1721, %v1671, 0
        %v1750 = vsel %vm1721, %v1672, 0
        %v1753 = vsel %vm1721, %v1673, 0
        %v1756 = vsel %vm1721, %v1674, 0
        %v1759 = vsel %vm1721, %v1675, 0
        %v1762 = vsel %vm1721, %v1676, 0
        %v1765 = vsel %vm1721, %v1677, 0
        %v1768 = vsel %vm1721, %v1678, 0
        %vm1770 = vcmask 1041408
        %v1772 = vsel %vm1770, %v1715, 0
        %v1775 = vsel %vm1770, %v1716, 0
        %1777 = vmatprep.subr.bf16.mxu0 %v1712
        %1778 = vmatpush1.bf16.msra.mxu0 %v1711
        %1779 = vmatprep.subr.bf16.mxu0 %v1714
        %1780 = vmatpush1.bf16.msra.mxu0 %v1713
        %1781 = vmatprep.subr.bf16.mxu0 %v1775
        %1782 = vmatpush1.bf16.msra.mxu0 %v1772
        %1783 = vmatprep.subr.bf16.mxu0 0
        %1784 = vmatpush1.bf16.msra.mxu0 0
        %1785 = vmatprep.subr.bf16.mxu0 0
        %1786 = vmatpush1.bf16.msra.mxu0 0
        %1787 = vmatprep.subr.bf16.mxu0 0
        %1788 = vmatpush1.bf16.msra.mxu0 0
        %1789 = vmatprep.subr.bf16.mxu0 0
        %1790 = vmatpush1.bf16.msra.mxu0 0
        %1791 = vmatprep.subr.bf16.mxu0 0
        %1792 = vmatpush1.bf16.msra.mxu0 0
        %1793 = vmatprep.subr.bf16.mxu0 0
        %1794 = vmatpush1.bf16.msra.mxu0 0
        %1795 = vmatprep.subr.bf16.mxu0 0
        %1796 = vmatpush1.bf16.msra.mxu0 0
        %1797 = vmatprep.subr.bf16.mxu0 0
        %1798 = vmatpush1.bf16.msra.mxu0 0
        %1799 = vmatprep.subr.bf16.mxu0 0
        %1800 = vmatpush1.bf16.msra.mxu0 0
        %1801 = vmatprep.subr.bf16.mxu0 0
        %1802 = vmatpush1.bf16.msra.mxu0 0
        %1803 = vmatprep.subr.bf16.mxu0 0
        %1804 = vmatpush1.bf16.msra.mxu0 0
        %1805 = vmatprep.subr.bf16.mxu0 0
        %1806 = vmatpush1.bf16.msra.mxu0 0
        %1807 = vmatprep.subr.bf16.mxu0 0
        %1808 = vmatpush1.bf16.msra.mxu0 0
        %1809 = vmatprep.mubr.bf16.mxu0 0
        %1810 = vmatmul.mubr.bf16.gmra.mrb[0].mxu0 %v1723
        %v1811 = vpop.f32.mrb[0].mxu0
        %v1812 = vadd.f32 %v1689, %v1811
        %v1813 = vpop.f32.mrb[0].mxu0
        %v1814 = vadd.f32 %v1693, %v1813
        %v1815 = vpop.f32.mrb[0].mxu0
        %v1816 = vadd.f32 %v1689, %v1815
        %v1817 = vpop.f32.mrb[0].mxu0
        %v1818 = vadd.f32 %v1693, %v1817
        %1819 = vmatprep.mubr.bf16.mxu0 0
        %1820 = vmatmul.mubr.bf16.gmra.mrb[0].mxu0 %v1726
        %v1821 = vpop.f32.mrb[0].mxu0
        %v1822 = vadd.f32 %v1689, %v1821
        %v1823 = vpop.f32.mrb[0].mxu0
        %v1824 = vadd.f32 %v1693, %v1823
        %v1825 = vpop.f32.mrb[0].mxu0
        %v1826 = vadd.f32 %v1689, %v1825
        %v1827 = vpop.f32.mrb[0].mxu0
        %v1828 = vadd.f32 %v1693, %v1827
        %1829 = vmatprep.mubr.bf16.mxu0 0
        %1830 = vmatmul.mubr.bf16.gmra.mrb[0].mxu0 %v1729
        %v1831 = vpop.f32.mrb[0].mxu0
        %v1832 = vadd.f32 %v1689, %v1831
        %v1833 = vpop.f32.mrb[0].mxu0
        %v1834 = vadd.f32 %v1693, %v1833
        %v1835 = vpop.f32.mrb[0].mxu0
        %v1836 = vadd.f32 %v1689, %v1835
        %v1837 = vpop.f32.mrb[0].mxu0
        %v1838 = vadd.f32 %v1693, %v1837
        %1839 = vmatprep.mubr.bf16.mxu0 0
        %1840 = vmatmul.mubr.bf16.gmra.mrb[0].mxu0 %v1732
        %v1841 = vpop.f32.mrb[0].mxu0
        %v1842 = vadd.f32 %v1689, %v1841
        %v1843 = vpop.f32.mrb[0].mxu0
        %v1844 = vadd.f32 %v1693, %v1843
        %v1845 = vpop.f32.mrb[0].mxu0
        %v1846 = vadd.f32 %v1689, %v1845
        %v1847 = vpop.f32.mrb[0].mxu0
        %v1848 = vadd.f32 %v1693, %v1847
        %1849 = vmatprep.mubr.bf16.mxu0 0
        %1850 = vmatmul.mubr.bf16.gmra.mrb[0].mxu0 %v1735
        %v1851 = vpop.f32.mrb[0].mxu0
        %v1852 = vadd.f32 %v1689, %v1851
        %v1853 = vpop.f32.mrb[0].mxu0
        %v1854 = vadd.f32 %v1693, %v1853
        %v1855 = vpop.f32.mrb[0].mxu0
        %v1856 = vadd.f32 %v1689, %v1855
        %v1857 = vpop.f32.mrb[0].mxu0
        %v1858 = vadd.f32 %v1693, %v1857
        %1859 = vmatprep.mubr.bf16.mxu0 0
        %1860 = vmatmul.mubr.bf16.gmra.mrb[0].mxu0 %v1738
        %v1861 = vpop.f32.mrb[0].mxu0
        %v1862 = vadd.f32 %v1689, %v1861
        %v1863 = vpop.f32.mrb[0].mxu0
        %v1864 = vadd.f32 %v1693, %v1863
        %v1865 = vpop.f32.mrb[0].mxu0
        %v1866 = vadd.f32 %v1689, %v1865
        %v1867 = vpop.f32.mrb[0].mxu0
        %v1868 = vadd.f32 %v1693, %v1867
        %1869 = vmatprep.mubr.bf16.mxu0 0
        %1870 = vmatmul.mubr.bf16.gmra.mrb[0].mxu0 %v1741
        %v1871 = vpop.f32.mrb[0].mxu0
        %v1872 = vadd.f32 %v1689, %v1871
        %v1873 = vpop.f32.mrb[0].mxu0
        %v1874 = vadd.f32 %v1693, %v1873
        %v1875 = vpop.f32.mrb[0].mxu0
        %v1876 = vadd.f32 %v1689, %v1875
        %v1877 = vpop.f32.mrb[0].mxu0
        %v1878 = vadd.f32 %v1693, %v1877
        %1879 = vmatprep.mubr.bf16.mxu0 0
        %1880 = vmatmul.mubr.bf16.gmra.mrb[0].mxu0 %v1744
        %v1881 = vpop.f32.mrb[0].mxu0
        %v1882 = vadd.f32 %v1689, %v1881
        %v1883 = vpop.f32.mrb[0].mxu0
        %v1884 = vadd.f32 %v1693, %v1883
        %v1885 = vpop.f32.mrb[0].mxu0
        %v1886 = vadd.f32 %v1689, %v1885
        %v1887 = vpop.f32.mrb[0].mxu0
        %v1888 = vadd.f32 %v1693, %v1887
        %1889 = vmatprep.mubr.bf16.mxu0 0
        %1890 = vmatmul.mubr.bf16.gmra.mrb[0].mxu0 %v1747
        %v1891 = vpop.f32.mrb[0].mxu0
        %v1892 = vadd.f32 %v1689, %v1891
        %v1893 = vpop.f32.mrb[0].mxu0
        %v1894 = vadd.f32 %v1693, %v1893
        %v1895 = vpop.f32.mrb[0].mxu0
        %v1896 = vadd.f32 %v1689, %v1895
        %v1897 = vpop.f32.mrb[0].mxu0
        %v1898 = vadd.f32 %v1693, %v1897
        %1899 = vmatprep.mubr.bf16.mxu0 0
        %1900 = vmatmul.mubr.bf16.gmra.mrb[0].mxu0 %v1750
        %v1901 = vpop.f32.mrb[0].mxu0
        %v1902 = vadd.f32 %v1689, %v1901
        %v1903 = vpop.f32.mrb[0].mxu0
        %v1904 = vadd.f32 %v1693, %v1903
        %v1905 = vpop.f32.mrb[0].mxu0
        %v1906 = vadd.f32 %v1689, %v1905
        %v1907 = vpop.f32.mrb[0].mxu0
        %v1908 = vadd.f32 %v1693, %v1907
        %1909 = vmatprep.mubr.bf16.mxu0 0
        %1910 = vmatmul.mubr.bf16.gmra.mrb[0].mxu0 %v1753
        %v1911 = vpop.f32.mrb[0].mxu0
        %v1912 = vadd.f32 %v1689, %v1911
        %v1913 = vpop.f32.mrb[0].mxu0
        %v1914 = vadd.f32 %v1693, %v1913
        %v1915 = vpop.f32.mrb[0].mxu0
        %v1916 = vadd.f32 %v1689, %v1915
        %v1917 = vpop.f32.mrb[0].mxu0
        %v1918 = vadd.f32 %v1693, %v1917
        %1919 = vmatprep.mubr.bf16.mxu0 0
        %1920 = vmatmul.mubr.bf16.gmra.mrb[0].mxu0 %v1756
        %v1921 = vpop.f32.mrb[0].mxu0
        %v1922 = vadd.f32 %v1689, %v1921
        %v1923 = vpop.f32.mrb[0].mxu0
        %v1924 = vadd.f32 %v1693, %v1923
        %v1925 = vpop.f32.mrb[0].mxu0
        %v1926 = vadd.f32 %v1689, %v1925
        %v1927 = vpop.f32.mrb[0].mxu0
        %v1928 = vadd.f32 %v1693, %v1927
        %1929 = vmatprep.mubr.bf16.mxu0 0
        %1930 = vmatmul.mubr.bf16.gmra.mrb[0].mxu0 %v1759
        %v1931 = vpop.f32.mrb[0].mxu0
        %v1932 = vadd.f32 %v1689, %v1931
        %v1933 = vpop.f32.mrb[0].mxu0
        %v1934 = vadd.f32 %v1693, %v1933
        %v1935 = vpop.f32.mrb[0].mxu0
        %v1936 = vadd.f32 %v1689, %v1935
        %v1937 = vpop.f32.mrb[0].mxu0
        %v1938 = vadd.f32 %v1693, %v1937
        %1939 = vmatprep.mubr.bf16.mxu0 0
        %1940 = vmatmul.mubr.bf16.gmra.mrb[0].mxu0 %v1762
        %v1941 = vpop.f32.mrb[0].mxu0
        %v1942 = vadd.f32 %v1689, %v1941
        %v1943 = vpop.f32.mrb[0].mxu0
        %v1944 = vadd.f32 %v1693, %v1943
        %v1945 = vpop.f32.mrb[0].mxu0
        %v1946 = vadd.f32 %v1689, %v1945
        %v1947 = vpop.f32.mrb[0].mxu0
        %v1948 = vadd.f32 %v1693, %v1947
        %1949 = vmatprep.mubr.bf16.mxu0 0
        %1950 = vmatmul.mubr.bf16.gmra.mrb[0].mxu0 %v1765
        %v1951 = vpop.f32.mrb[0].mxu0
        %v1952 = vadd.f32 %v1689, %v1951
        %v1953 = vpop.f32.mrb[0].mxu0
        %v1954 = vadd.f32 %v1693, %v1953
        %v1955 = vpop.f32.mrb[0].mxu0
        %v1956 = vadd.f32 %v1689, %v1955
        %v1957 = vpop.f32.mrb[0].mxu0
        %v1958 = vadd.f32 %v1693, %v1957
        %1959 = vmatprep.mubr.bf16.mxu0 0
        %1960 = vmatmul.mubr.bf16.gmra.mrb[0].mxu0 %v1768
        %v1961 = vpop.f32.mrb[0].mxu0
        %v1962 = vadd.f32 %v1689, %v1961
        %v1963 = vpop.f32.mrb[0].mxu0
        %v1964 = vadd.f32 %v1693, %v1963
        %v1965 = vpop.f32.mrb[0].mxu0
        %v1966 = vadd.f32 %v1689, %v1965
        %v1967 = vpop.f32.mrb[0].mxu0
        %v1968 = vadd.f32 %v1693, %v1967
        %1969 = vdwg.mxu0
        %v1970 = vmax.f32 %v1812, 0.0
        %v1971 = vmax.f32 %v1814, 0.0
        %v1972 = vmax.f32 %v1816, 0.0
        %v1973 = vmax.f32 %v1818, 0.0
        %v1974 = vmax.f32 %v1822, 0.0
        %v1975 = vmax.f32 %v1824, 0.0
        %v1976 = vmax.f32 %v1826, 0.0
        %v1977 = vmax.f32 %v1828, 0.0
        %v1978 = vmax.f32 %v1832, 0.0
        %v1979 = vmax.f32 %v1834, 0.0
        %v1980 = vmax.f32 %v1836, 0.0
        %v1981 = vmax.f32 %v1838, 0.0
        %v1982 = vmax.f32 %v1842, 0.0
        %v1983 = vmax.f32 %v1844, 0.0
        %v1984 = vmax.f32 %v1846, 0.0
        %v1985 = vmax.f32 %v1848, 0.0
        %v1986 = vmax.f32 %v1852, 0.0
        %v1987 = vmax.f32 %v1854, 0.0
        %v1988 = vmax.f32 %v1856, 0.0
        %v1989 = vmax.f32 %v1858, 0.0
        %v1990 = vmax.f32 %v1862, 0.0
        %v1991 = vmax.f32 %v1864, 0.0
        %v1992 = vmax.f32 %v1866, 0.0
        %v1993 = vmax.f32 %v1868, 0.0
        %v1994 = vmax.f32 %v1872, 0.0
        %v1995 = vmax.f32 %v1874, 0.0
        %v1996 = vmax.f32 %v1876, 0.0
        %v1997 = vmax.f32 %v1878, 0.0
        %v1998 = vmax.f32 %v1882, 0.0
        %v1999 = vmax.f32 %v1884, 0.0
        %v2000 = vmax.f32 %v1886, 0.0
        %v2001 = vmax.f32 %v1888, 0.0
        %v2002 = vmax.f32 %v1892, 0.0
        %v2003 = vmax.f32 %v1894, 0.0
        %v2004 = vmax.f32 %v1896, 0.0
        %v2005 = vmax.f32 %v1898, 0.0
        %v2006 = vmax.f32 %v1902, 0.0
        %v2007 = vmax.f32 %v1904, 0.0
        %v2008 = vmax.f32 %v1906, 0.0
        %v2009 = vmax.f32 %v1908, 0.0
        %v2010 = vmax.f32 %v1912, 0.0
        %v2011 = vmax.f32 %v1914, 0.0
        %v2012 = vmax.f32 %v1916, 0.0
        %v2013 = vmax.f32 %v1918, 0.0
        %v2014 = vmax.f32 %v1922, 0.0
        %v2015 = vmax.f32 %v1924, 0.0
        %v2016 = vmax.f32 %v1926, 0.0
        %v2017 = vmax.f32 %v1928, 0.0
        %v2018 = vmax.f32 %v1932, 0.0
        %v2019 = vmax.f32 %v1934, 0.0
        %v2020 = vmax.f32 %v1936, 0.0
        %v2021 = vmax.f32 %v1938, 0.0
        %v2022 = vmax.f32 %v1942, 0.0
        %v2023 = vmax.f32 %v1944, 0.0
        %v2024 = vmax.f32 %v1946, 0.0
        %v2025 = vmax.f32 %v1948, 0.0
        %v2026 = vmax.f32 %v1952, 0.0
        %v2027 = vmax.f32 %v1954, 0.0
        %v2028 = vmax.f32 %v1956, 0.0
        %v2029 = vmax.f32 %v1958, 0.0
        %v2030 = vmax.f32 %v1962, 0.0
        %v2031 = vmax.f32 %v1964, 0.0
        %v2032 = vmax.f32 %v1966, 0.0
        %v2033 = vmax.f32 %v1968, 0.0
        %v2034 = vpack.c.bf16 %v1972, %v1970
        %v2035 = vpack.c.bf16 %v1973, %v1971
        %v2036 = vpack.c.bf16 %v1976, %v1974
        %v2037 = vpack.c.bf16 %v1977, %v1975
        %v2038 = vpack.c.bf16 %v1980, %v1978
        %v2039 = vpack.c.bf16 %v1981, %v1979
        %v2040 = vpack.c.bf16 %v1984, %v1982
        %v2041 = vpack.c.bf16 %v1985, %v1983
        %v2042 = vpack.c.bf16 %v1988, %v1986
        %v2043 = vpack.c.bf16 %v1989, %v1987
        %v2044 = vpack.c.bf16 %v1992, %v1990
        %v2045 = vpack.c.bf16 %v1993, %v1991
        %v2046 = vpack.c.bf16 %v1996, %v1994
        %v2047 = vpack.c.bf16 %v1997, %v1995
        %v2048 = vpack.c.bf16 %v2000, %v1998
        %v2049 = vpack.c.bf16 %v2001, %v1999
        %v2050 = vpack.c.bf16 %v2004, %v2002
        %v2051 = vpack.c.bf16 %v2005, %v2003
        %v2052 = vpack.c.bf16 %v2008, %v2006
        %v2053 = vpack.c.bf16 %v2009, %v2007
        %v2054 = vpack.c.bf16 %v2012, %v2010
        %v2055 = vpack.c.bf16 %v2013, %v2011
        %v2056 = vpack.c.bf16 %v2016, %v2014
        %v2057 = vpack.c.bf16 %v2017, %v2015
        %v2058 = vpack.c.bf16 %v2020, %v2018
        %v2059 = vpack.c.bf16 %v2021, %v2019
        %v2060 = vpack.c.bf16 %v2024, %v2022
        %v2061 = vpack.c.bf16 %v2025, %v2023
        %v2062 = vpack.c.bf16 %v2028, %v2026
        %v2063 = vpack.c.bf16 %v2029, %v2027
        %v2064 = vpack.c.bf16 %v2032, %v2030
        %v2065 = vpack.c.bf16 %v2033, %v2031
        %v2066 = vld [vmem:[%s3] sm:$0xf]
        %v2067 = vld [vmem:[%s3 + $0x4] sm:$0xf]
        %v2068 = vld [vmem:[%s3 + $0x8] sm:$0xf]
        %v2069 = vld [vmem:[%s3 + $0xc] sm:$0xf]
        %v2070 = vld [vmem:[%s3 + $0x10] sm:$0xf]
        %v2071 = vld [vmem:[%s3 + $0x14] sm:$0xf]
        %v2072 = vld [vmem:[%s3 + $0x18] sm:$0xf]
        %v2073 = vld [vmem:[%s3 + $0x1c] sm:$0xf]
        %v2074 = vld [vmem:[%s3 + $0x20] sm:$0xf]
        %v2075 = vld [vmem:[%s3 + $0x24] sm:$0xf]
        %v2076 = vld [vmem:[%s3 + $0x28] sm:$0xf]
        %v2077 = vld [vmem:[%s3 + $0x2c] sm:$0xf]
        %v2078 = vld [vmem:[%s3 + $0x30] sm:$0xf]
        %v2079 = vld [vmem:[%s3 + $0x34] sm:$0xf]
        %v2080 = vld [vmem:[%s3 + $0x38] sm:$0xf]
        %v2081 = vld [vmem:[%s3 + $0x3c] sm:$0xf]
        %v2082 = vld [vmem:[%s3 + $0x40] sm:$0xf]
        %v2083 = vld [vmem:[%s3 + $0x44] sm:$0xf]
        %v2084 = vld [vmem:[%s3 + $0x48] sm:$0xf]
        %v2085 = vld [vmem:[%s3 + $0x4c] sm:$0xf]
        %v2086 = vld [vmem:[%s3 + $0x50] sm:$0xf]
        %v2087 = vld [vmem:[%s3 + $0x54] sm:$0xf]
        %v2088 = vld [vmem:[%s3 + $0x58] sm:$0xf]
        %v2089 = vld [vmem:[%s3 + $0x5c] sm:$0xf]
        %v2090 = vld [vmem:[%s3 + $0x60] sm:$0xf]
        %v2091 = vld [vmem:[%s3 + $0x64] sm:$0xf]
        %v2092 = vld [vmem:[%s3 + $0x68] sm:$0xf]
        %v2093 = vld [vmem:[%s3 + $0x6c] sm:$0xf]
        %v2094 = vld [vmem:[%s3 + $0x70] sm:$0xf]
        %v2095 = vld [vmem:[%s3 + $0x74] sm:$0xf]
        %v2096 = vld [vmem:[%s3 + $0x78] sm:$0xf]
        %v2097 = vld [vmem:[%s3 + $0x7c] sm:$0xf]
        %v2098 = vld [vmem:[#allocation2] sm:$0x1]
        %v2100 = vlaneseq
        %v2101 = vshrl.u32 %v2100, 7
        %v2102 = vsub.s32 0, %v2101
        %v2103 = vrot.slane %v2098, %v2102
        %v2137 = vunpack.c.l.b16 %v2066
        %v2138 = vunpack.c.l.b16 %v2067
        %v2139 = vunpack.c.l.b16 %v2068
        %v2140 = vunpack.c.l.b16 %v2069
        %v2141 = vunpack.c.l.b16 %v2070
        %v2142 = vunpack.c.l.b16 %v2071
        %v2143 = vunpack.c.l.b16 %v2072
        %v2144 = vunpack.c.l.b16 %v2073
        %v2145 = vunpack.c.l.b16 %v2074
        %v2146 = vunpack.c.l.b16 %v2075
        %v2147 = vunpack.c.l.b16 %v2076
        %v2148 = vunpack.c.l.b16 %v2077
        %v2149 = vunpack.c.l.b16 %v2078
        %v2150 = vunpack.c.l.b16 %v2079
        %v2151 = vunpack.c.l.b16 %v2080
        %v2152 = vunpack.c.l.b16 %v2081
        %v2153 = vunpack.c.l.b16 %v2082
        %v2154 = vunpack.c.l.b16 %v2083
        %v2155 = vunpack.c.l.b16 %v2084
        %v2156 = vunpack.c.l.b16 %v2085
        %v2157 = vunpack.c.l.b16 %v2086
        %v2158 = vunpack.c.l.b16 %v2087
        %v2159 = vunpack.c.l.b16 %v2088
        %v2160 = vunpack.c.l.b16 %v2089
        %v2161 = vunpack.c.l.b16 %v2090
        %v2162 = vunpack.c.l.b16 %v2091
        %v2163 = vunpack.c.l.b16 %v2092
        %v2164 = vunpack.c.l.b16 %v2093
        %v2165 = vunpack.c.l.b16 %v2094
        %v2166 = vunpack.c.l.b16 %v2095
        %v2167 = vunpack.c.l.b16 %v2096
        %v2168 = vunpack.c.l.b16 %v2097
        %v2169 = vpack.c.b16 %v2138, %v2137
        %v2170 = vpack.c.b16 %v2140, %v2139
        %v2171 = vpack.c.b16 %v2142, %v2141
        %v2172 = vpack.c.b16 %v2144, %v2143
        %v2173 = vpack.c.b16 %v2146, %v2145
        %v2174 = vpack.c.b16 %v2148, %v2147
        %v2175 = vpack.c.b16 %v2150, %v2149
        %v2176 = vpack.c.b16 %v2152, %v2151
        %v2177 = vpack.c.b16 %v2154, %v2153
        %v2178 = vpack.c.b16 %v2156, %v2155
        %v2179 = vpack.c.b16 %v2158, %v2157
        %v2180 = vpack.c.b16 %v2160, %v2159
        %v2181 = vpack.c.b16 %v2162, %v2161
        %v2182 = vpack.c.b16 %v2164, %v2163
        %v2183 = vpack.c.b16 %v2166, %v2165
        %v2184 = vpack.c.b16 %v2168, %v2167
        %2201 = vmatprep.subr.bf16.mxu0 0
        %2202 = vmatpush1.bf16.msra.mxu0 %v2169
        %2203 = vmatprep.subr.bf16.mxu0 0
        %2204 = vmatpush1.bf16.msra.mxu0 %v2170
        %2205 = vmatprep.subr.bf16.mxu0 0
        %2206 = vmatpush1.bf16.msra.mxu0 %v2171
        %2207 = vmatprep.subr.bf16.mxu0 0
        %2208 = vmatpush1.bf16.msra.mxu0 %v2172
        %2209 = vmatprep.subr.bf16.mxu0 0
        %2210 = vmatpush1.bf16.msra.mxu0 %v2173
        %2211 = vmatprep.subr.bf16.mxu0 0
        %2212 = vmatpush1.bf16.msra.mxu0 %v2174
        %2213 = vmatprep.subr.bf16.mxu0 0
        %2214 = vmatpush1.bf16.msra.mxu0 %v2175
        %2215 = vmatprep.subr.bf16.mxu0 0
        %2216 = vmatpush1.bf16.msra.mxu0 %v2176
        %2217 = vmatprep.subr.bf16.mxu0 0
        %2218 = vmatpush1.bf16.msra.mxu0 %v2177
        %2219 = vmatprep.subr.bf16.mxu0 0
        %2220 = vmatpush1.bf16.msra.mxu0 %v2178
        %2221 = vmatprep.subr.bf16.mxu0 0
        %2222 = vmatpush1.bf16.msra.mxu0 %v2179
        %2223 = vmatprep.subr.bf16.mxu0 0
        %2224 = vmatpush1.bf16.msra.mxu0 %v2180
        %2225 = vmatprep.subr.bf16.mxu0 0
        %2226 = vmatpush1.bf16.msra.mxu0 %v2181
        %2227 = vmatprep.subr.bf16.mxu0 0
        %2228 = vmatpush1.bf16.msra.mxu0 %v2182
        %2229 = vmatprep.subr.bf16.mxu0 0
        %2230 = vmatpush1.bf16.msra.mxu0 %v2183
        %2231 = vmatprep.subr.bf16.mxu0 0
        %2232 = vmatpush1.bf16.msra.mxu0 %v2184
        %2233 = vmatprep.mubr.bf16.mxu0 %v2035
        %2234 = vmatmul.mubr.bf16.gmra.mrb[0].mxu0 %v2034
        %v2235 = vpop.f32.mrb[0].mxu0
        %v2236 = vadd.f32 %v2103, %v2235
        %v2237 = vpop.f32.mrb[0].mxu0
        %v2238 = vpop.f32.mrb[0].mxu0
        %v2239 = vadd.f32 %v2103, %v2238
        %v2240 = vpop.f32.mrb[0].mxu0
        %2241 = vmatprep.mubr.bf16.mxu0 %v2037
        %2242 = vmatmul.mubr.bf16.gmra.mrb[0].mxu0 %v2036
        %v2243 = vpop.f32.mrb[0].mxu0
        %v2244 = vadd.f32 %v2103, %v2243
        %v2245 = vpop.f32.mrb[0].mxu0
        %v2246 = vpop.f32.mrb[0].mxu0
        %v2247 = vadd.f32 %v2103, %v2246
        %v2248 = vpop.f32.mrb[0].mxu0
        %2249 = vmatprep.mubr.bf16.mxu0 %v2039
        %2250 = vmatmul.mubr.bf16.gmra.mrb[0].mxu0 %v2038
        %v2251 = vpop.f32.mrb[0].mxu0
        %v2252 = vadd.f32 %v2103, %v2251
        %v2253 = vpop.f32.mrb[0].mxu0
        %v2254 = vpop.f32.mrb[0].mxu0
        %v2255 = vadd.f32 %v2103, %v2254
        %v2256 = vpop.f32.mrb[0].mxu0
        %2257 = vmatprep.mubr.bf16.mxu0 %v2041
        %2258 = vmatmul.mubr.bf16.gmra.mrb[0].mxu0 %v2040
        %v2259 = vpop.f32.mrb[0].mxu0
        %v2260 = vadd.f32 %v2103, %v2259
        %v2261 = vpop.f32.mrb[0].mxu0
        %v2262 = vpop.f32.mrb[0].mxu0
        %v2263 = vadd.f32 %v2103, %v2262
        %v2264 = vpop.f32.mrb[0].mxu0
        %2265 = vmatprep.mubr.bf16.mxu0 %v2043
        %2266 = vmatmul.mubr.bf16.gmra.mrb[0].mxu0 %v2042
        %v2267 = vpop.f32.mrb[0].mxu0
        %v2268 = vadd.f32 %v2103, %v2267
        %v2269 = vpop.f32.mrb[0].mxu0
        %v2270 = vpop.f32.mrb[0].mxu0
        %v2271 = vadd.f32 %v2103, %v2270
        %v2272 = vpop.f32.mrb[0].mxu0
        %2273 = vmatprep.mubr.bf16.mxu0 %v2045
        %2274 = vmatmul.mubr.bf16.gmra.mrb[0].mxu0 %v2044
        %v2275 = vpop.f32.mrb[0].mxu0
        %v2276 = vadd.f32 %v2103, %v2275
        %v2277 = vpop.f32.mrb[0].mxu0
        %v2278 = vpop.f32.mrb[0].mxu0
        %v2279 = vadd.f32 %v2103, %v2278
        %v2280 = vpop.f32.mrb[0].mxu0
        %2281 = vmatprep.mubr.bf16.mxu0 %v2047
        %2282 = vmatmul.mubr.bf16.gmra.mrb[0].mxu0 %v2046
        %v2283 = vpop.f32.mrb[0].mxu0
        %v2284 = vadd.f32 %v2103, %v2283
        %v2285 = vpop.f32.mrb[0].mxu0
        %v2286 = vpop.f32.mrb[0].mxu0
        %v2287 = vadd.f32 %v2103, %v2286
        %v2288 = vpop.f32.mrb[0].mxu0
        %2289 = vmatprep.mubr.bf16.mxu0 %v2049
        %2290 = vmatmul.mubr.bf16.gmra.mrb[0].mxu0 %v2048
        %v2291 = vpop.f32.mrb[0].mxu0
        %v2292 = vadd.f32 %v2103, %v2291
        %v2293 = vpop.f32.mrb[0].mxu0
        %v2294 = vpop.f32.mrb[0].mxu0
        %v2295 = vadd.f32 %v2103, %v2294
        %v2296 = vpop.f32.mrb[0].mxu0
        %2297 = vmatprep.mubr.bf16.mxu0 %v2051
        %2298 = vmatmul.mubr.bf16.gmra.mrb[0].mxu0 %v2050
        %v2299 = vpop.f32.mrb[0].mxu0
        %v2300 = vadd.f32 %v2103, %v2299
        %v2301 = vpop.f32.mrb[0].mxu0
        %v2302 = vpop.f32.mrb[0].mxu0
        %v2303 = vadd.f32 %v2103, %v2302
        %v2304 = vpop.f32.mrb[0].mxu0
        %2305 = vmatprep.mubr.bf16.mxu0 %v2053
        %2306 = vmatmul.mubr.bf16.gmra.mrb[0].mxu0 %v2052
        %v2307 = vpop.f32.mrb[0].mxu0
        %v2308 = vadd.f32 %v2103, %v2307
        %v2309 = vpop.f32.mrb[0].mxu0
        %v2310 = vpop.f32.mrb[0].mxu0
        %v2311 = vadd.f32 %v2103, %v2310
        %v2312 = vpop.f32.mrb[0].mxu0
        %2313 = vmatprep.mubr.bf16.mxu0 %v2055
        %2314 = vmatmul.mubr.bf16.gmra.mrb[0].mxu0 %v2054
        %v2315 = vpop.f32.mrb[0].mxu0
        %v2316 = vadd.f32 %v2103, %v2315
        %v2317 = vpop.f32.mrb[0].mxu0
        %v2318 = vpop.f32.mrb[0].mxu0
        %v2319 = vadd.f32 %v2103, %v2318
        %v2320 = vpop.f32.mrb[0].mxu0
        %2321 = vmatprep.mubr.bf16.mxu0 %v2057
        %2322 = vmatmul.mubr.bf16.gmra.mrb[0].mxu0 %v2056
        %v2323 = vpop.f32.mrb[0].mxu0
        %v2324 = vadd.f32 %v2103, %v2323
        %v2325 = vpop.f32.mrb[0].mxu0
        %v2326 = vpop.f32.mrb[0].mxu0
        %v2327 = vadd.f32 %v2103, %v2326
        %v2328 = vpop.f32.mrb[0].mxu0
        %2329 = vmatprep.mubr.bf16.mxu0 %v2059
        %2330 = vmatmul.mubr.bf16.gmra.mrb[0].mxu0 %v2058
        %v2331 = vpop.f32.mrb[0].mxu0
        %v2332 = vadd.f32 %v2103, %v2331
        %v2333 = vpop.f32.mrb[0].mxu0
        %v2334 = vpop.f32.mrb[0].mxu0
        %v2335 = vadd.f32 %v2103, %v2334
        %v2336 = vpop.f32.mrb[0].mxu0
        %2337 = vmatprep.mubr.bf16.mxu0 %v2061
        %2338 = vmatmul.mubr.bf16.gmra.mrb[0].mxu0 %v2060
        %v2339 = vpop.f32.mrb[0].mxu0
        %v2340 = vadd.f32 %v2103, %v2339
        %v2341 = vpop.f32.mrb[0].mxu0
        %v2342 = vpop.f32.mrb[0].mxu0
        %v2343 = vadd.f32 %v2103, %v2342
        %v2344 = vpop.f32.mrb[0].mxu0
        %2345 = vmatprep.mubr.bf16.mxu0 %v2063
        %2346 = vmatmul.mubr.bf16.gmra.mrb[0].mxu0 %v2062
        %v2347 = vpop.f32.mrb[0].mxu0
        %v2348 = vadd.f32 %v2103, %v2347
        %v2349 = vpop.f32.mrb[0].mxu0
        %v2350 = vpop.f32.mrb[0].mxu0
        %v2351 = vadd.f32 %v2103, %v2350
        %v2352 = vpop.f32.mrb[0].mxu0
        %2353 = vmatprep.mubr.bf16.mxu0 %v2065
        %2354 = vmatmul.mubr.bf16.gmra.mrb[0].mxu0 %v2064
        %v2355 = vpop.f32.mrb[0].mxu0
        %v2356 = vadd.f32 %v2103, %v2355
        %v2357 = vpop.f32.mrb[0].mxu0
        %v2358 = vpop.f32.mrb[0].mxu0
        %v2359 = vadd.f32 %v2103, %v2358
        %v2360 = vpop.f32.mrb[0].mxu0
        %2361 = vdwg.mxu0
        %v2362 = vsub.f32 0.0, %v2236
        %v2363 = vsub.f32 0.0, %v2239
        %v2364 = vsub.f32 0.0, %v2244
        %v2365 = vsub.f32 0.0, %v2247
        %v2366 = vsub.f32 0.0, %v2252
        %v2367 = vsub.f32 0.0, %v2255
        %v2368 = vsub.f32 0.0, %v2260
        %v2369 = vsub.f32 0.0, %v2263
        %v2370 = vsub.f32 0.0, %v2268
        %v2371 = vsub.f32 0.0, %v2271
        %v2372 = vsub.f32 0.0, %v2276
        %v2373 = vsub.f32 0.0, %v2279
        %v2374 = vsub.f32 0.0, %v2284
        %v2375 = vsub.f32 0.0, %v2287
        %v2376 = vsub.f32 0.0, %v2292
        %v2377 = vsub.f32 0.0, %v2295
        %v2378 = vsub.f32 0.0, %v2300
        %v2379 = vsub.f32 0.0, %v2303
        %v2380 = vsub.f32 0.0, %v2308
        %v2381 = vsub.f32 0.0, %v2311
        %v2382 = vsub.f32 0.0, %v2316
        %v2383 = vsub.f32 0.0, %v2319
        %v2384 = vsub.f32 0.0, %v2324
        %v2385 = vsub.f32 0.0, %v2327
        %v2386 = vsub.f32 0.0, %v2332
        %v2387 = vsub.f32 0.0, %v2335
        %v2388 = vsub.f32 0.0, %v2340
        %v2389 = vsub.f32 0.0, %v2343
        %v2390 = vsub.f32 0.0, %v2348
        %v2391 = vsub.f32 0.0, %v2351
        %v2392 = vsub.f32 0.0, %v2356
        %v2393 = vsub.f32 0.0, %v2359
        %v2394 = vmul.f32 %v2362, 1.442695
        %v2395 = vpow.pop %v2394
        %v2396 = vmul.f32 %v2363, 1.442695
        %v2397 = vpow.pop %v2396
        %v2398 = vmul.f32 %v2364, 1.442695
        %v2399 = vpow.pop %v2398
        %v2400 = vmul.f32 %v2365, 1.442695
        %v2401 = vpow.pop %v2400
        %v2402 = vmul.f32 %v2366, 1.442695
        %v2403 = vpow.pop %v2402
        %v2404 = vmul.f32 %v2367, 1.442695
        %v2405 = vpow.pop %v2404
        %v2406 = vmul.f32 %v2368, 1.442695
        %v2407 = vpow.pop %v2406
        %v2408 = vmul.f32 %v2369, 1.442695
        %v2409 = vpow.pop %v2408
        %v2410 = vmul.f32 %v2370, 1.442695
        %v2411 = vpow.pop %v2410
        %v2412 = vmul.f32 %v2371, 1.442695
        %v2413 = vpow.pop %v2412
        %v2414 = vmul.f32 %v2372, 1.442695
        %v2415 = vpow.pop %v2414
        %v2416 = vmul.f32 %v2373, 1.442695
        %v2417 = vpow.pop %v2416
        %v2418 = vmul.f32 %v2374, 1.442695
        %v2419 = vpow.pop %v2418
        %v2420 = vmul.f32 %v2375, 1.442695
        %v2421 = vpow.pop %v2420
        %v2422 = vmul.f32 %v2376, 1.442695
        %v2423 = vpow.pop %v2422
        %v2424 = vmul.f32 %v2377, 1.442695
        %v2425 = vpow.pop %v2424
        %v2426 = vmul.f32 %v2378, 1.442695
        %v2427 = vpow.pop %v2426
        %v2428 = vmul.f32 %v2379, 1.442695
        %v2429 = vpow.pop %v2428
        %v2430 = vmul.f32 %v2380, 1.442695
        %v2431 = vpow.pop %v2430
        %v2432 = vmul.f32 %v2381, 1.442695
        %v2433 = vpow.pop %v2432
        %v2434 = vmul.f32 %v2382, 1.442695
        %v2435 = vpow.pop %v2434
        %v2436 = vmul.f32 %v2383, 1.442695
        %v2437 = vpow.pop %v2436
        %v2438 = vmul.f32 %v2384, 1.442695
        %v2439 = vpow.pop %v2438
        %v2440 = vmul.f32 %v2385, 1.442695
        %v2441 = vpow.pop %v2440
        %v2442 = vmul.f32 %v2386, 1.442695
        %v2443 = vpow.pop %v2442
        %v2444 = vmul.f32 %v2387, 1.442695
        %v2445 = vpow.pop %v2444
        %v2446 = vmul.f32 %v2388, 1.442695
        %v2447 = vpow.pop %v2446
        %v2448 = vmul.f32 %v2389, 1.442695
        %v2449 = vpow.pop %v2448
        %v2450 = vmul.f32 %v2390, 1.442695
        %v2451 = vpow.pop %v2450
        %v2452 = vmul.f32 %v2391, 1.442695
        %v2453 = vpow.pop %v2452
        %v2454 = vmul.f32 %v2392, 1.442695
        %v2455 = vpow.pop %v2454
        %v2456 = vmul.f32 %v2393, 1.442695
        %v2457 = vpow.pop %v2456
        %v2458 = vadd.f32 %v2395, 1.0
        %v2459 = vadd.f32 %v2397, 1.0
        %v2460 = vadd.f32 %v2399, 1.0
        %v2461 = vadd.f32 %v2401, 1.0
        %v2462 = vadd.f32 %v2403, 1.0
        %v2463 = vadd.f32 %v2405, 1.0
        %v2464 = vadd.f32 %v2407, 1.0
        %v2465 = vadd.f32 %v2409, 1.0
        %v2466 = vadd.f32 %v2411, 1.0
        %v2467 = vadd.f32 %v2413, 1.0
        %v2468 = vadd.f32 %v2415, 1.0
        %v2469 = vadd.f32 %v2417, 1.0
        %v2470 = vadd.f32 %v2419, 1.0
        %v2471 = vadd.f32 %v2421, 1.0
        %v2472 = vadd.f32 %v2423, 1.0
        %v2473 = vadd.f32 %v2425, 1.0
        %v2474 = vadd.f32 %v2427, 1.0
        %v2475 = vadd.f32 %v2429, 1.0
        %v2476 = vadd.f32 %v2431, 1.0
        %v2477 = vadd.f32 %v2433, 1.0
        %v2478 = vadd.f32 %v2435, 1.0
        %v2479 = vadd.f32 %v2437, 1.0
        %v2480 = vadd.f32 %v2439, 1.0
        %v2481 = vadd.f32 %v2441, 1.0
        %v2482 = vadd.f32 %v2443, 1.0
        %v2483 = vadd.f32 %v2445, 1.0
        %v2484 = vadd.f32 %v2447, 1.0
        %v2485 = vadd.f32 %v2449, 1.0
        %v2486 = vadd.f32 %v2451, 1.0
        %v2487 = vadd.f32 %v2453, 1.0
        %v2488 = vadd.f32 %v2455, 1.0
        %v2489 = vadd.f32 %v2457, 1.0
        %v2490 = vrcp.pop %v2458
        %v2491 = vrcp.pop %v2459
        %v2492 = vrcp.pop %v2460
        %v2493 = vrcp.pop %v2461
        %v2494 = vrcp.pop %v2462
        %v2495 = vrcp.pop %v2463
        %v2496 = vrcp.pop %v2464
        %v2497 = vrcp.pop %v2465
        %v2498 = vrcp.pop %v2466
        %v2499 = vrcp.pop %v2467
        %v2500 = vrcp.pop %v2468
        %v2501 = vrcp.pop %v2469
        %v2502 = vrcp.pop %v2470
        %v2503 = vrcp.pop %v2471
        %v2504 = vrcp.pop %v2472
        %v2505 = vrcp.pop %v2473
        %v2506 = vrcp.pop %v2474
        %v2507 = vrcp.pop %v2475
        %v2508 = vrcp.pop %v2476
        %v2509 = vrcp.pop %v2477
        %v2510 = vrcp.pop %v2478
        %v2511 = vrcp.pop %v2479
        %v2512 = vrcp.pop %v2480
        %v2513 = vrcp.pop %v2481
        %v2514 = vrcp.pop %v2482
        %v2515 = vrcp.pop %v2483
        %v2516 = vrcp.pop %v2484
        %v2517 = vrcp.pop %v2485
        %v2518 = vrcp.pop %v2486
        %v2519 = vrcp.pop %v2487
        %v2520 = vrcp.pop %v2488
        %v2521 = vrcp.pop %v2489
        %2523 = vset.pattern.permute.xlu0 0
        %2524 = vperm.xlu0 %2523, %v2490
        %v2525 = vpop.permute.xlu0 %2524
        %2528 = vset.pattern.permute.xlu0 0
        %2529 = vperm.xlu0 %2528, %v2491
        %v2530 = vpop.permute.xlu0 %2529
        %2533 = vset.pattern.permute.xlu0 0
        %2534 = vperm.xlu0 %2533, %v2492
        %v2535 = vpop.permute.xlu0 %2534
        %2538 = vset.pattern.permute.xlu0 0
        %2539 = vperm.xlu0 %2538, %v2493
        %v2540 = vpop.permute.xlu0 %2539
        %2543 = vset.pattern.permute.xlu0 0
        %2544 = vperm.xlu0 %2543, %v2494
        %v2545 = vpop.permute.xlu0 %2544
        %2548 = vset.pattern.permute.xlu0 0
        %2549 = vperm.xlu0 %2548, %v2495
        %v2550 = vpop.permute.xlu0 %2549
        %2553 = vset.pattern.permute.xlu0 0
        %2554 = vperm.xlu0 %2553, %v2496
        %v2555 = vpop.permute.xlu0 %2554
        %2558 = vset.pattern.permute.xlu0 0
        %2559 = vperm.xlu0 %2558, %v2497
        %v2560 = vpop.permute.xlu0 %2559
        %2563 = vset.pattern.permute.xlu0 0
        %2564 = vperm.xlu0 %2563, %v2498
        %v2565 = vpop.permute.xlu0 %2564
        %2568 = vset.pattern.permute.xlu0 0
        %2569 = vperm.xlu0 %2568, %v2499
        %v2570 = vpop.permute.xlu0 %2569
        %2573 = vset.pattern.permute.xlu0 0
        %2574 = vperm.xlu0 %2573, %v2500
        %v2575 = vpop.permute.xlu0 %2574
        %2578 = vset.pattern.permute.xlu0 0
        %2579 = vperm.xlu0 %2578, %v2501
        %v2580 = vpop.permute.xlu0 %2579
        %2583 = vset.pattern.permute.xlu0 0
        %2584 = vperm.xlu0 %2583, %v2502
        %v2585 = vpop.permute.xlu0 %2584
        %2588 = vset.pattern.permute.xlu0 0
        %2589 = vperm.xlu0 %2588, %v2503
        %v2590 = vpop.permute.xlu0 %2589
        %2593 = vset.pattern.permute.xlu0 0
        %2594 = vperm.xlu0 %2593, %v2504
        %v2595 = vpop.permute.xlu0 %2594
        %2598 = vset.pattern.permute.xlu0 0
        %2599 = vperm.xlu0 %2598, %v2505
        %v2600 = vpop.permute.xlu0 %2599
        %2603 = vset.pattern.permute.xlu0 0
        %2604 = vperm.xlu0 %2603, %v2506
        %v2605 = vpop.permute.xlu0 %2604
        %2608 = vset.pattern.permute.xlu0 0
        %2609 = vperm.xlu0 %2608, %v2507
        %v2610 = vpop.permute.xlu0 %2609
        %2613 = vset.pattern.permute.xlu0 0
        %2614 = vperm.xlu0 %2613, %v2508
        %v2615 = vpop.permute.xlu0 %2614
        %2618 = vset.pattern.permute.xlu0 0
        %2619 = vperm.xlu0 %2618, %v2509
        %v2620 = vpop.permute.xlu0 %2619
        %2623 = vset.pattern.permute.xlu0 0
        %2624 = vperm.xlu0 %2623, %v2510
        %v2625 = vpop.permute.xlu0 %2624
        %2628 = vset.pattern.permute.xlu0 0
        %2629 = vperm.xlu0 %2628, %v2511
        %v2630 = vpop.permute.xlu0 %2629
        %2633 = vset.pattern.permute.xlu0 0
        %2634 = vperm.xlu0 %2633, %v2512
        %v2635 = vpop.permute.xlu0 %2634
        %2638 = vset.pattern.permute.xlu0 0
        %2639 = vperm.xlu0 %2638, %v2513
        %v2640 = vpop.permute.xlu0 %2639
        %2643 = vset.pattern.permute.xlu0 0
        %2644 = vperm.xlu0 %2643, %v2514
        %v2645 = vpop.permute.xlu0 %2644
        %2648 = vset.pattern.permute.xlu0 0
        %2649 = vperm.xlu0 %2648, %v2515
        %v2650 = vpop.permute.xlu0 %2649
        %2653 = vset.pattern.permute.xlu0 0
        %2654 = vperm.xlu0 %2653, %v2516
        %v2655 = vpop.permute.xlu0 %2654
        %2658 = vset.pattern.permute.xlu0 0
        %2659 = vperm.xlu0 %2658, %v2517
        %v2660 = vpop.permute.xlu0 %2659
        %2663 = vset.pattern.permute.xlu0 0
        %2664 = vperm.xlu0 %2663, %v2518
        %v2665 = vpop.permute.xlu0 %2664
        %2668 = vset.pattern.permute.xlu0 0
        %2669 = vperm.xlu0 %2668, %v2519
        %v2670 = vpop.permute.xlu0 %2669
        %2673 = vset.pattern.permute.xlu0 0
        %2674 = vperm.xlu0 %2673, %v2520
        %v2675 = vpop.permute.xlu0 %2674
        %2678 = vset.pattern.permute.xlu0 0
        %2679 = vperm.xlu0 %2678, %v2521
        %v2680 = vpop.permute.xlu0 %2679
        %v2682 = vmul.f32 %v257, %v2525
        %v2683 = vmul.f32 %v258, %v2530
        %v2684 = vmul.f32 %v259, %v2535
        %v2685 = vmul.f32 %v260, %v2540
        %v2686 = vmul.f32 %v261, %v2545
        %v2687 = vmul.f32 %v262, %v2550
        %v2688 = vmul.f32 %v263, %v2555
        %v2689 = vmul.f32 %v264, %v2560
        %v2690 = vmul.f32 %v265, %v2565
        %v2691 = vmul.f32 %v266, %v2570
        %v2692 = vmul.f32 %v267, %v2575
        %v2693 = vmul.f32 %v268, %v2580
        %v2694 = vmul.f32 %v269, %v2585
        %v2695 = vmul.f32 %v270, %v2590
        %v2696 = vmul.f32 %v271, %v2595
        %v2697 = vmul.f32 %v272, %v2600
        %v2698 = vmul.f32 %v273, %v2605
        %v2699 = vmul.f32 %v274, %v2610
        %v2700 = vmul.f32 %v275, %v2615
        %v2701 = vmul.f32 %v276, %v2620
        %v2702 = vmul.f32 %v277, %v2625
        %v2703 = vmul.f32 %v278, %v2630
        %v2704 = vmul.f32 %v279, %v2635
        %v2705 = vmul.f32 %v280, %v2640
        %v2706 = vmul.f32 %v281, %v2645
        %v2707 = vmul.f32 %v282, %v2650
        %v2708 = vmul.f32 %v283, %v2655
        %v2709 = vmul.f32 %v284, %v2660
        %v2710 = vmul.f32 %v285, %v2665
        %v2711 = vmul.f32 %v286, %v2670
        %v2712 = vmul.f32 %v287, %v2675
        %v2713 = vmul.f32 %v288, %v2680
        %v2714 = vsel %vm1401, %v2682, 0.0
        %v2715 = vsel %vm1401, %v2683, 0.0
        %v2716 = vadd.f32 %v2714, %v2715
        %v2717 = vsel %vm1401, %v2684, 0.0
        %v2718 = vadd.f32 %v2716, %v2717
        %v2719 = vsel %vm1401, %v2685, 0.0
        %v2720 = vadd.f32 %v2718, %v2719
        %v2721 = vsel %vm1401, %v2686, 0.0
        %v2722 = vadd.f32 %v2720, %v2721
        %v2723 = vsel %vm1401, %v2687, 0.0
        %v2724 = vadd.f32 %v2722, %v2723
        %v2725 = vsel %vm1401, %v2688, 0.0
        %v2726 = vadd.f32 %v2724, %v2725
        %v2727 = vsel %vm1401, %v2689, 0.0
        %v2728 = vadd.f32 %v2726, %v2727
        %v2729 = vsel %vm1401, %v2690, 0.0
        %v2730 = vadd.f32 %v2728, %v2729
        %v2731 = vsel %vm1401, %v2691, 0.0
        %v2732 = vadd.f32 %v2730, %v2731
        %v2733 = vsel %vm1401, %v2692, 0.0
        %v2734 = vadd.f32 %v2732, %v2733
        %v2735 = vsel %vm1401, %v2693, 0.0
        %v2736 = vadd.f32 %v2734, %v2735
        %v2737 = vsel %vm1401, %v2694, 0.0
        %v2738 = vadd.f32 %v2736, %v2737
        %v2739 = vsel %vm1401, %v2695, 0.0
        %v2740 = vadd.f32 %v2738, %v2739
        %v2741 = vsel %vm1401, %v2696, 0.0
        %v2742 = vadd.f32 %v2740, %v2741
        %v2743 = vsel %vm1401, %v2697, 0.0
        %v2744 = vadd.f32 %v2742, %v2743
        %v2745 = vsel %vm1401, %v2698, 0.0
        %v2746 = vadd.f32 %v2744, %v2745
        %v2747 = vsel %vm1401, %v2699, 0.0
        %v2748 = vadd.f32 %v2746, %v2747
        %v2749 = vsel %vm1401, %v2700, 0.0
        %v2750 = vadd.f32 %v2748, %v2749
        %v2751 = vsel %vm1401, %v2701, 0.0
        %v2752 = vadd.f32 %v2750, %v2751
        %v2753 = vsel %vm1401, %v2702, 0.0
        %v2754 = vadd.f32 %v2752, %v2753
        %v2755 = vsel %vm1401, %v2703, 0.0
        %v2756 = vadd.f32 %v2754, %v2755
        %v2757 = vsel %vm1401, %v2704, 0.0
        %v2758 = vadd.f32 %v2756, %v2757
        %v2759 = vsel %vm1401, %v2705, 0.0
        %v2760 = vadd.f32 %v2758, %v2759
        %v2761 = vsel %vm1401, %v2706, 0.0
        %v2762 = vadd.f32 %v2760, %v2761
        %v2763 = vsel %vm1401, %v2707, 0.0
        %v2764 = vadd.f32 %v2762, %v2763
        %v2765 = vsel %vm1401, %v2708, 0.0
        %v2766 = vadd.f32 %v2764, %v2765
        %v2767 = vsel %vm1401, %v2709, 0.0
        %v2768 = vadd.f32 %v2766, %v2767
        %v2769 = vsel %vm1401, %v2710, 0.0
        %v2770 = vadd.f32 %v2768, %v2769
        %v2771 = vsel %vm1401, %v2711, 0.0
        %v2772 = vadd.f32 %v2770, %v2771
        %v2773 = vsel %vm1401, %v2712, 0.0
        %v2774 = vadd.f32 %v2772, %v2773
        %v2775 = vsel %vm1401, %v2713, 0.0
        %v2776 = vadd.f32 %v2774, %v2775
        %v2777 = vrot.slane %v2776, 4
        %v2778 = vadd.f32 %v2776, %v2777
        %v2779 = vrot.slane %v2778, 2
        %v2780 = vadd.f32 %v2778, %v2779
        %v2781 = vrot.slane %v2780, 1
        %v2782 = vadd.f32 %v2780, %v2781
        %v2783 = vmul.f32 %v2782, 0.00390625
        %v2784 = vsel %vm1401, %v2783, 0.0
        %2785 = vst [vmem:[%s218] sm:$0x1] %v2784
        %s2786 = sand.u32 %s139, 1
        %s2787 = scalar_lea.sflag [#allocation4], %s2786
        %s2788 = sand.u32 %s139, 1
        %s2789 = scalar_lea.vmem [#allocation3], %s2788
        // Predicated region
        $region41: #{_forward_one.1} parent=39 // pred_check
          %p2790 = pneg %p149
        $region42: #{_forward_one.1} parent=39 // pred_check_branch
          %2792 = sbr.rel (%p2790) target = $region44
        $region43: #{_forward_one.1} parent=39 // pred_region
          %s2794 = ssub.s32 16, 16
          %2795 = vsyncadd %s2787, %s2794
          %s2796 = smul.addr %s21, 16
          %s2797 = scalar_lea.hbm %s5, %s2796
          %s2799 = sshll.u32 %s2789, 4
          %s2800 = int_to_ptr.vmem [resolvable:$true] %s2799
          %2802 = dma.vmem_to_hbm [thread:$0]  %s2800, 16, %s2797, %s2787
        $region44: #{_forward_one.1} parent=39 // pred_fallthru
          _
      $region40: #{_forward_one.1} parent=5 // pred_fallthru
        _
      %p2803 = scmp.le.s32.totalorder 2, %s16
      // Predicated region
      $region45: #{_forward_one.1} parent=5 // pred_check
        %p2804 = pneg %p2803
      $region46: #{_forward_one.1} parent=5 // pred_check_branch
        %2806 = sbr.rel (%p2804) target = $region48
      $region47: #{_forward_one.1} parent=5 // pred_region
        %s2807 = ssub.s32 %s16, 2
        // Predicated region
        $region49: #{_forward_one.1} parent=47 // pred_check
          %p2808 = pneg %p155
        $region50: #{_forward_one.1} parent=47 // pred_check_branch
          %2810 = sbr.rel (%p2808) target = $region52
        $region51: #{_forward_one.1} parent=47 // pred_region
          %s2811 = sand.u32 %s140, 1
          %s2812 = scalar_lea.sflag [#allocation4], %s2811
          %s2813 = sand.u32 %s140, 1
          %s2814 = scalar_lea.vmem [#allocation3], %s2813
          %2815 = dma.done %s2812, 16
        $region52: #{_forward_one.1} parent=47 // pred_fallthru
          _
      $region48: #{_forward_one.1} parent=5 // pred_fallthru
        _
    $region6: #{_forward_one.1} parent=1 // loop_footer
      %s20 = sadd.s32 1, %s16
    $region7: #{_forward_one.1} parent=1 // loop_footer_branch
      %15 = sbr.rel target = $region3
    $region8: #{_forward_one.1} parent=1 // loop_exit
      _
    %2816 = vsyncpa [#allocation4], 1
    %s2817 = scalar_lea.sflag [#allocation4], 1
    %2818 = vsyncpa %s2817, 1

</llo_original>
